<compile_context>
chip_gen: v5e
topology: v5e:2x2
jax: 0.10.0
libtpu: 0.0.40
codegen_flags: <defaults>
</compile_context>

<pallas_src>
import functools
import numpy as np
import jax
import jax.numpy as jnp
from jax import lax
from jax.experimental import pallas as pl
from jax.experimental.pallas import tpu as pltpu


def _round_up(x, m):
    return (x + m - 1) // m * m


def _pad_gate_blocks(w, h, hp, n_gates=3):
    """Pad each of the n_gates stacked (h, ...) blocks along axis 0 to hp rows."""
    blocks = jnp.split(w, n_gates, axis=0)
    pad_width = [(0, hp - h)] + [(0, 0)] * (w.ndim - 1)
    return jnp.concatenate([jnp.pad(b, pad_width) for b in blocks], axis=0)


def _gru_block_kernel(xproj_ref, lens_ref, whht_ref, bhh_ref, h0_ref,
                      out_ref, h_scr, *, hidden_padded, block_t):
    """Process `block_t` GRU time steps.

    Grid = (batch_blocks, time_blocks); time is the carried ("arbitrary") axis and the
    hidden state persists across time blocks in VMEM scratch (re-initialized per batch
    block at tb == 0).  xproj already contains x_t @ W_ih^T + b_ih (hoisted matmul).
    """
    tb = pl.program_id(1)
    hp = hidden_padded

    @pl.when(tb == 0)
    def _():
        h_scr[...] = jnp.broadcast_to(h0_ref[...], h_scr.shape)

    lens = lens_ref[...]                         # (Bb, 1) int32
    whht = whht_ref[...]                         # (Hp, 3Hp)
    bhh = bhh_ref[...]                           # (1, 3Hp)

    def step(i, h):
        t = tb * block_t + i
        xg = xproj_ref[i]                        # (Bb, 3Hp): x_t @ W_ih^T + b_ih
        hg = jnp.dot(h, whht, preferred_element_type=jnp.float32) + bhh
        # PyTorch GRU gate order: r, z, n (gate slices are lane-aligned since hp % 128 == 0)
        r = jax.nn.sigmoid(xg[:, 0 * hp:1 * hp] + hg[:, 0 * hp:1 * hp])
        z = jax.nn.sigmoid(xg[:, 1 * hp:2 * hp] + hg[:, 1 * hp:2 * hp])
        n = jnp.tanh(xg[:, 2 * hp:3 * hp] + r * hg[:, 2 * hp:3 * hp])
        h_new = (1.0 - z) * n + z * h
        # packed-sequence masking: past each length, state does not advance and output is 0
        valid = t < lens                         # (Bb, 1) bool, broadcasts over Hp
        out_ref[i] = jnp.where(valid, h_new, 0.0)
        return jnp.where(valid, h_new, h)

    h_scr[...] = lax.fori_loop(0, block_t, step, h_scr[...], unroll=True)


def gru_layer_forward(embed, batch_lens, params, *, block_t=8, block_b=8):
    """Pallas forward of GRULayer.forward (batch_first, zero-padded outputs)."""
    B, T, E = embed.shape
    H = params["h0"].shape[0]
    Hp = _round_up(H, 128)          # lane-aligned gates, lane-dense output stores
    Bp = _round_up(B, block_b)      # sublane-aligned batch rows
    Tp = _round_up(T, block_t)

    f32 = jnp.float32
    wih_p = _pad_gate_blocks(params["wih"].astype(f32), H, Hp)               # (3Hp, E)
    whh_p = _pad_gate_blocks(params["whh"].astype(f32), H, Hp)               # (3Hp, H)
    whh_p = jnp.pad(whh_p, ((0, 0), (0, Hp - H)))                            # (3Hp, Hp)
    b_ih_p = _pad_gate_blocks(params["b_ih"].astype(f32), H, Hp)             # (3Hp,)
    b_hh_p = _pad_gate_blocks(params["b_hh"].astype(f32), H, Hp).reshape(1, 3 * Hp)
    h0_p = jnp.pad(params["h0"].astype(f32), (0, Hp - H)).reshape(1, Hp)     # (1, Hp)

    # Hoisted input projection: one large MXU-friendly matmul outside the serial loop.
    xproj = jnp.einsum("bte,ge->btg", embed.astype(f32), wih_p) + b_ih_p     # (B, T, 3Hp)
    xproj = jnp.transpose(xproj, (1, 0, 2))                                  # (T, B, 3Hp)
    xproj = jnp.pad(xproj, ((0, Tp - T), (0, Bp - B), (0, 0)))               # (Tp, Bp, 3Hp)

    lens_p = jnp.pad(batch_lens.astype(jnp.int32), (0, Bp - B)).reshape(Bp, 1)

    kernel = functools.partial(_gru_block_kernel, hidden_padded=Hp, block_t=block_t)

    out_tm = pl.pallas_call(
        kernel,
        out_shape=jax.ShapeDtypeStruct((Tp, Bp, Hp), jnp.float32),
        grid_spec=pltpu.PrefetchScalarGridSpec(
            num_scalar_prefetch=0,
            grid=(Bp // block_b, Tp // block_t),
            in_specs=[
                pl.BlockSpec((block_t, block_b, 3 * Hp), lambda b, t: (t, b, 0)),  # xproj
                pl.BlockSpec((block_b, 1), lambda b, t: (b, 0)),                   # lens
                pl.BlockSpec((Hp, 3 * Hp), lambda b, t: (0, 0)),                   # W_hh^T
                pl.BlockSpec((1, 3 * Hp), lambda b, t: (0, 0)),                    # b_hh
                pl.BlockSpec((1, Hp), lambda b, t: (0, 0)),                        # h0 row
            ],
            out_specs=pl.BlockSpec((block_t, block_b, Hp), lambda b, t: (t, b, 0)),
            scratch_shapes=[pltpu.VMEM((block_b, Hp), jnp.float32)],               # h carry
        ),
        compiler_params=pltpu.CompilerParams(
            dimension_semantics=("parallel", "arbitrary")),   # batch parallel, time carried
    )(xproj, lens_p, jnp.transpose(whh_p), b_hh_p, h0_p)

    return jnp.transpose(out_tm, (1, 0, 2))[:B, :T, :H]       # (B, T, H)


def ref_gru_forward(embed, batch_lens, params):
    """Pure-JAX reference (mirrors PyTorch nn.GRU + pack/pad semantics)."""
    B, T, E = embed.shape
    H = params["h0"].shape[0]
    Wih, Whh = params["wih"], params["whh"]
    b_ih, b_hh = params["b_ih"], params["b_hh"]
    h = jnp.broadcast_to(params["h0"].reshape(1, H), (B, H))
    outs = []
    for t in range(T):
        x = embed[:, t, :]
        gi = x @ Wih.T + b_ih
        gh = h @ Whh.T + b_hh
        r = jax.nn.sigmoid(gi[:, 0 * H:1 * H] + gh[:, 0 * H:1 * H])
        z = jax.nn.sigmoid(gi[:, 1 * H:2 * H] + gh[:, 1 * H:2 * H])
        n = jnp.tanh(gi[:, 2 * H:3 * H] + r * gh[:, 2 * H:3 * H])
        h_new = (1.0 - z) * n + z * h
        valid = (t < batch_lens).reshape(B, 1)
        h = jnp.where(valid, h_new, h)
        outs.append(jnp.where(valid, h_new, 0.0))
    return jnp.stack(outs, axis=1)


def init_params(key, emb_dim, hidden_dim):
    """GRU parameter init (uniform(-1/sqrt(H), 1/sqrt(H)), like PyTorch defaults)."""
    k1, k2, k3, k4 = jax.random.split(key, 4)
    bound = 1.0 / np.sqrt(hidden_dim)
    u = lambda k, shape: jax.random.uniform(k, shape, jnp.float32, -bound, bound)
    return {
        "wih": u(k1, (3 * hidden_dim, emb_dim)),     # gate order r, z, n
        "whh": u(k2, (3 * hidden_dim, hidden_dim)),
        "b_ih": u(k3, (3 * hidden_dim,)),
        "b_hh": u(k4, (3 * hidden_dim,)),
        "h0": jnp.zeros((hidden_dim,), jnp.float32),  # nn.Parameter(torch.zeros(...))
    }


if __name__ == "__main__":
    B, T, EMB, HID = 2, 8, 16, 32

    key = jax.random.PRNGKey(0)
    k_emb, k_par = jax.random.split(key)
    embed = jax.random.normal(k_emb, (B, T, EMB), jnp.float32)
    batch_lens = jnp.array([T, 5], dtype=jnp.int32)   # max(len) == T, matching padded shape
    params = init_params(k_par, EMB, HID)

    out = gru_layer_forward(embed, batch_lens, params)
    out = jax.block_until_ready(out)

    ref = ref_gru_forward(embed, batch_lens, params)
    assert out.shape == (B, T, HID)
    np.testing.assert_allclose(np.asarray(out), np.asarray(ref), rtol=1e-5, atol=1e-5)

    print("KERNEL_OK")
</pallas_src>

<mosaic_0001>
module attributes {stable_mosaic.version = 11 : i64} {
  func.func @_gru_block_kernel(%arg0: i32, %arg1: i32, %arg2: memref<8x8x384xf32, #tpu.memory_space<vmem>>, %arg3: memref<8x1xi32, #tpu.memory_space<vmem>>, %arg4: memref<128x384xf32, #tpu.memory_space<vmem>>, %arg5: memref<1x384xf32, #tpu.memory_space<vmem>>, %arg6: memref<1x128xf32, #tpu.memory_space<vmem>>, %arg7: memref<8x8x128xf32, #tpu.memory_space<vmem>>, %arg8: memref<8x128xf32, #tpu.memory_space<vmem>>) attributes {dimension_semantics = [#tpu.dimension_semantics<parallel>, #tpu.dimension_semantics<arbitrary>], iteration_bounds = array<i64: 1, 1>, scalar_prefetch = 0 : i64, scratch_operands = 1 : i64, tpu.core_type = #tpu.core_type<tc>, window_params = [{transform_indices = @transform_0, window_bounds = array<i64: 8, 8, 384>}, {transform_indices = @transform_1, window_bounds = array<i64: 8, 1>}, {pipeline_mode = #tpu.pipeline_mode<synchronous>, transform_indices = @transform_2, window_bounds = array<i64: 128, 384>}, {pipeline_mode = #tpu.pipeline_mode<synchronous>, transform_indices = @transform_3, window_bounds = array<i64: 1, 384>}, {pipeline_mode = #tpu.pipeline_mode<synchronous>, transform_indices = @transform_4, window_bounds = array<i64: 1, 128>}, {transform_indices = @transform_5, window_bounds = array<i64: 8, 8, 128>}]} {
    %c0_i32 = arith.constant 0 : i32
    %0 = arith.cmpi eq, %arg1, %c0_i32 : i32
    %1 = arith.extui %0 : i1 to i32
    %c0_i32_0 = arith.constant 0 : i32
    %2 = arith.cmpi ne, %1, %c0_i32_0 : i32
    scf.if %2 {
      %c0_90 = arith.constant 0 : index
      %c0_91 = arith.constant 0 : index
      %384 = vector.load %arg6[%c0_90, %c0_91] : memref<1x128xf32, #tpu.memory_space<vmem>>, vector<1x128xf32>
      %385 = vector.shape_cast %384 : vector<1x128xf32> to vector<1x128xf32>
      %386 = vector.broadcast %385 : vector<1x128xf32> to vector<8x128xf32>
      %c0_92 = arith.constant 0 : index
      %c0_93 = arith.constant 0 : index
      %387 = vector.load %arg8[%c0_92, %c0_93] : memref<8x128xf32, #tpu.memory_space<vmem>>, vector<8x128xf32>
      tpu.vector_store %arg8[%c0_92, %c0_93], %386 {strides = array<i32>} : memref<8x128xf32, #tpu.memory_space<vmem>>, vector<8x128xf32>,
    } else {
    }
    %c0 = arith.constant 0 : index
    %c0_1 = arith.constant 0 : index
    %3 = vector.load %arg3[%c0, %c0_1] : memref<8x1xi32, #tpu.memory_space<vmem>>, vector<8x1xi32>
    %c0_2 = arith.constant 0 : index
    %c0_3 = arith.constant 0 : index
    %4 = vector.load %arg4[%c0_2, %c0_3] : memref<128x384xf32, #tpu.memory_space<vmem>>, vector<128x384xf32>
    %c0_4 = arith.constant 0 : index
    %c0_5 = arith.constant 0 : index
    %5 = vector.load %arg5[%c0_4, %c0_5] : memref<1x384xf32, #tpu.memory_space<vmem>>, vector<1x384xf32>
    %c0_6 = arith.constant 0 : index
    %c0_7 = arith.constant 0 : index
    %6 = vector.load %arg8[%c0_6, %c0_7] : memref<8x128xf32, #tpu.memory_space<vmem>>, vector<8x128xf32>
    %c0_i32_8 = arith.constant 0 : i32
    %c8_i32 = arith.constant 8 : i32
    %7 = arith.muli %arg1, %c8_i32 : i32
    %8 = arith.addi %7, %c0_i32_8 : i32
    %9 = arith.index_cast %c0_i32_8 : i32 to index
    %c0_9 = arith.constant 0 : index
    %c0_10 = arith.constant 0 : index
    %10 = vector.load %arg2[%9, %c0_9, %c0_10] : memref<8x8x384xf32, #tpu.memory_space<vmem>>, vector<1x8x384xf32>
    %11 = vector.shape_cast %10 : vector<1x8x384xf32> to vector<8x384xf32>
    %cst = arith.constant dense<0.000000e+00> : vector<8x384xf32>
    %12 = tpu.matmul %6, %4, %cst {dimension_numbers = #tpu.dot_dimension_numbers<[1], [0], [0], [1], [0, 0, 1, 1], [], []>} : vector<8x128xf32>, vector<128x384xf32>, vector<8x384xf32> -> vector<8x384xf32>
    %13 = vector.broadcast %5 : vector<1x384xf32> to vector<8x384xf32>
    %14 = arith.addf %12, %13 : vector<8x384xf32>
    %15 = vector.extract_strided_slice %11 {offsets = [0, 0], sizes = [8, 128], strides = [1, 1]} : vector<8x384xf32> to vector<8x128xf32>
    %16 = vector.extract_strided_slice %14 {offsets = [0, 0], sizes = [8, 128], strides = [1, 1]} : vector<8x384xf32> to vector<8x128xf32>
    %17 = arith.addf %15, %16 : vector<8x128xf32>
    %18 = arith.negf %17 : vector<8x128xf32>
    %19 = math.exp %18 : vector<8x128xf32>
    %cst_11 = arith.constant 1.000000e+00 : f32
    %20 = vector.broadcast %cst_11 : f32 to vector<8x128xf32>
    %21 = arith.addf %20, %19 : vector<8x128xf32>
    %22 = arith.divf %20, %21 : vector<8x128xf32>
    %23 = vector.extract_strided_slice %11 {offsets = [0, 128], sizes = [8, 128], strides = [1, 1]} : vector<8x384xf32> to vector<8x128xf32>
    %24 = vector.extract_strided_slice %14 {offsets = [0, 128], sizes = [8, 128], strides = [1, 1]} : vector<8x384xf32> to vector<8x128xf32>
    %25 = arith.addf %23, %24 : vector<8x128xf32>
    %26 = arith.negf %25 : vector<8x128xf32>
    %27 = math.exp %26 : vector<8x128xf32>
    %cst_12 = arith.constant 1.000000e+00 : f32
    %28 = vector.broadcast %cst_12 : f32 to vector<8x128xf32>
    %29 = arith.addf %28, %27 : vector<8x128xf32>
    %30 = arith.divf %28, %29 : vector<8x128xf32>
    %31 = vector.extract_strided_slice %11 {offsets = [0, 256], sizes = [8, 128], strides = [1, 1]} : vector<8x384xf32> to vector<8x128xf32>
    %32 = vector.extract_strided_slice %14 {offsets = [0, 256], sizes = [8, 128], strides = [1, 1]} : vector<8x384xf32> to vector<8x128xf32>
    %33 = arith.mulf %22, %32 : vector<8x128xf32>
    %34 = arith.addf %31, %33 : vector<8x128xf32>
    %35 = math.tanh %34 : vector<8x128xf32>
    %cst_13 = arith.constant 1.000000e+00 : f32
    %36 = vector.broadcast %cst_13 : f32 to vector<8x128xf32>
    %37 = arith.subf %36, %30 : vector<8x128xf32>
    %38 = arith.mulf %37, %35 : vector<8x128xf32>
    %39 = arith.mulf %30, %6 : vector<8x128xf32>
    %40 = arith.addf %38, %39 : vector<8x128xf32>
    %41 = vector.broadcast %8 : i32 to vector<8x1xi32>
    %42 = arith.cmpi slt, %41, %3 : vector<8x1xi32>
    %cst_14 = arith.constant 0.000000e+00 : f32
    %43 = vector.shape_cast %42 : vector<8x1xi1> to vector<8x1xi1>
    %44 = vector.broadcast %43 : vector<8x1xi1> to vector<8x128xi1>
    %45 = vector.broadcast %cst_14 : f32 to vector<8x128xf32>
    %46 = arith.select %44, %40, %45 : vector<8x128xi1>, vector<8x128xf32>
    %47 = arith.index_cast %c0_i32_8 : i32 to index
    %c0_15 = arith.constant 0 : index
    %c0_16 = arith.constant 0 : index
    %48 = vector.load %arg7[%47, %c0_15, %c0_16] : memref<8x8x128xf32, #tpu.memory_space<vmem>>, vector<1x8x128xf32>
    %49 = vector.shape_cast %48 : vector<1x8x128xf32> to vector<8x128xf32>
    %50 = vector.shape_cast %46 : vector<8x128xf32> to vector<1x8x128xf32>
    tpu.vector_store %arg7[%47, %c0_15, %c0_16], %50 {strides = array<i32>} : memref<8x8x128xf32, #tpu.memory_space<vmem>>, vector<1x8x128xf32>,
    %51 = vector.shape_cast %42 : vector<8x1xi1> to vector<8x1xi1>
    %52 = vector.broadcast %51 : vector<8x1xi1> to vector<8x128xi1>
    %53 = arith.select %52, %40, %6 : vector<8x128xi1>, vector<8x128xf32>
    %c1_i32 = arith.constant 1 : i32
    %c8_i32_17 = arith.constant 8 : i32
    %54 = arith.muli %arg1, %c8_i32_17 : i32
    %55 = arith.addi %54, %c1_i32 : i32
    %56 = arith.index_cast %c1_i32 : i32 to index
    %c0_18 = arith.constant 0 : index
    %c0_19 = arith.constant 0 : index
    %57 = vector.load %arg2[%56, %c0_18, %c0_19] : memref<8x8x384xf32, #tpu.memory_space<vmem>>, vector<1x8x384xf32>
    %58 = vector.shape_cast %57 : vector<1x8x384xf32> to vector<8x384xf32>
    %cst_20 = arith.constant dense<0.000000e+00> : vector<8x384xf32>
    %59 = tpu.matmul %53, %4, %cst_20 {dimension_numbers = #tpu.dot_dimension_numbers<[1], [0], [0], [1], [0, 0, 1, 1], [], []>} : vector<8x128xf32>, vector<128x384xf32>, vector<8x384xf32> -> vector<8x384xf32>
    %60 = vector.broadcast %5 : vector<1x384xf32> to vector<8x384xf32>
    %61 = arith.addf %59, %60 : vector<8x384xf32>
    %62 = vector.extract_strided_slice %58 {offsets = [0, 0], sizes = [8, 128], strides = [1, 1]} : vector<8x384xf32> to vector<8x128xf32>
    %63 = vector.extract_strided_slice %61 {offsets = [0, 0], sizes = [8, 128], strides = [1, 1]} : vector<8x384xf32> to vector<8x128xf32>
    %64 = arith.addf %62, %63 : vector<8x128xf32>
    %65 = arith.negf %64 : vector<8x128xf32>
    %66 = math.exp %65 : vector<8x128xf32>
    %cst_21 = arith.constant 1.000000e+00 : f32
    %67 = vector.broadcast %cst_21 : f32 to vector<8x128xf32>
    %68 = arith.addf %67, %66 : vector<8x128xf32>
    %69 = arith.divf %67, %68 : vector<8x128xf32>
    %70 = vector.extract_strided_slice %58 {offsets = [0, 128], sizes = [8, 128], strides = [1, 1]} : vector<8x384xf32> to vector<8x128xf32>
    %71 = vector.extract_strided_slice %61 {offsets = [0, 128], sizes = [8, 128], strides = [1, 1]} : vector<8x384xf32> to vector<8x128xf32>
    %72 = arith.addf %70, %71 : vector<8x128xf32>
    %73 = arith.negf %72 : vector<8x128xf32>
    %74 = math.exp %73 : vector<8x128xf32>
    %cst_22 = arith.constant 1.000000e+00 : f32
    %75 = vector.broadcast %cst_22 : f32 to vector<8x128xf32>
    %76 = arith.addf %75, %74 : vector<8x128xf32>
    %77 = arith.divf %75, %76 : vector<8x128xf32>
    %78 = vector.extract_strided_slice %58 {offsets = [0, 256], sizes = [8, 128], strides = [1, 1]} : vector<8x384xf32> to vector<8x128xf32>
    %79 = vector.extract_strided_slice %61 {offsets = [0, 256], sizes = [8, 128], strides = [1, 1]} : vector<8x384xf32> to vector<8x128xf32>
    %80 = arith.mulf %69, %79 : vector<8x128xf32>
    %81 = arith.addf %78, %80 : vector<8x128xf32>
    %82 = math.tanh %81 : vector<8x128xf32>
    %cst_23 = arith.constant 1.000000e+00 : f32
    %83 = vector.broadcast %cst_23 : f32 to vector<8x128xf32>
    %84 = arith.subf %83, %77 : vector<8x128xf32>
    %85 = arith.mulf %84, %82 : vector<8x128xf32>
    %86 = arith.mulf %77, %53 : vector<8x128xf32>
    %87 = arith.addf %85, %86 : vector<8x128xf32>
    %88 = vector.broadcast %55 : i32 to vector<8x1xi32>
    %89 = arith.cmpi slt, %88, %3 : vector<8x1xi32>
    %cst_24 = arith.constant 0.000000e+00 : f32
    %90 = vector.shape_cast %89 : vector<8x1xi1> to vector<8x1xi1>
    %91 = vector.broadcast %90 : vector<8x1xi1> to vector<8x128xi1>
    %92 = vector.broadcast %cst_24 : f32 to vector<8x128xf32>
    %93 = arith.select %91, %87, %92 : vector<8x128xi1>, vector<8x128xf32>
    %94 = arith.index_cast %c1_i32 : i32 to index
    %c0_25 = arith.constant 0 : index
    %c0_26 = arith.constant 0 : index
    %95 = vector.load %arg7[%94, %c0_25, %c0_26] : memref<8x8x128xf32, #tpu.memory_space<vmem>>, vector<1x8x128xf32>
    %96 = vector.shape_cast %95 : vector<1x8x128xf32> to vector<8x128xf32>
    %97 = vector.shape_cast %93 : vector<8x128xf32> to vector<1x8x128xf32>
    tpu.vector_store %arg7[%94, %c0_25, %c0_26], %97 {strides = array<i32>} : memref<8x8x128xf32, #tpu.memory_space<vmem>>, vector<1x8x128xf32>,
    %98 = vector.shape_cast %89 : vector<8x1xi1> to vector<8x1xi1>
    %99 = vector.broadcast %98 : vector<8x1xi1> to vector<8x128xi1>
    %100 = arith.select %99, %87, %53 : vector<8x128xi1>, vector<8x128xf32>
    %c2_i32 = arith.constant 2 : i32
    %c8_i32_27 = arith.constant 8 : i32
    %101 = arith.muli %arg1, %c8_i32_27 : i32
    %102 = arith.addi %101, %c2_i32 : i32
    %103 = arith.index_cast %c2_i32 : i32 to index
    %c0_28 = arith.constant 0 : index
    %c0_29 = arith.constant 0 : index
    %104 = vector.load %arg2[%103, %c0_28, %c0_29] : memref<8x8x384xf32, #tpu.memory_space<vmem>>, vector<1x8x384xf32>
    %105 = vector.shape_cast %104 : vector<1x8x384xf32> to vector<8x384xf32>
    %cst_30 = arith.constant dense<0.000000e+00> : vector<8x384xf32>
    %106 = tpu.matmul %100, %4, %cst_30 {dimension_numbers = #tpu.dot_dimension_numbers<[1], [0], [0], [1], [0, 0, 1, 1], [], []>} : vector<8x128xf32>, vector<128x384xf32>, vector<8x384xf32> -> vector<8x384xf32>
    %107 = vector.broadcast %5 : vector<1x384xf32> to vector<8x384xf32>
    %108 = arith.addf %106, %107 : vector<8x384xf32>
    %109 = vector.extract_strided_slice %105 {offsets = [0, 0], sizes = [8, 128], strides = [1, 1]} : vector<8x384xf32> to vector<8x128xf32>
    %110 = vector.extract_strided_slice %108 {offsets = [0, 0], sizes = [8, 128], strides = [1, 1]} : vector<8x384xf32> to vector<8x128xf32>
    %111 = arith.addf %109, %110 : vector<8x128xf32>
    %112 = arith.negf %111 : vector<8x128xf32>
    %113 = math.exp %112 : vector<8x128xf32>
    %cst_31 = arith.constant 1.000000e+00 : f32
    %114 = vector.broadcast %cst_31 : f32 to vector<8x128xf32>
    %115 = arith.addf %114, %113 : vector<8x128xf32>
    %116 = arith.divf %114, %115 : vector<8x128xf32>
    %117 = vector.extract_strided_slice %105 {offsets = [0, 128], sizes = [8, 128], strides = [1, 1]} : vector<8x384xf32> to vector<8x128xf32>
    %118 = vector.extract_strided_slice %108 {offsets = [0, 128], sizes = [8, 128], strides = [1, 1]} : vector<8x384xf32> to vector<8x128xf32>
    %119 = arith.addf %117, %118 : vector<8x128xf32>
    %120 = arith.negf %119 : vector<8x128xf32>
    %121 = math.exp %120 : vector<8x128xf32>
    %cst_32 = arith.constant 1.000000e+00 : f32
    %122 = vector.broadcast %cst_32 : f32 to vector<8x128xf32>
    %123 = arith.addf %122, %121 : vector<8x128xf32>
    %124 = arith.divf %122, %123 : vector<8x128xf32>
    %125 = vector.extract_strided_slice %105 {offsets = [0, 256], sizes = [8, 128], strides = [1, 1]} : vector<8x384xf32> to vector<8x128xf32>
    %126 = vector.extract_strided_slice %108 {offsets = [0, 256], sizes = [8, 128], strides = [1, 1]} : vector<8x384xf32> to vector<8x128xf32>
    %127 = arith.mulf %116, %126 : vector<8x128xf32>
    %128 = arith.addf %125, %127 : vector<8x128xf32>
    %129 = math.tanh %128 : vector<8x128xf32>
    %cst_33 = arith.constant 1.000000e+00 : f32
    %130 = vector.broadcast %cst_33 : f32 to vector<8x128xf32>
    %131 = arith.subf %130, %124 : vector<8x128xf32>
    %132 = arith.mulf %131, %129 : vector<8x128xf32>
    %133 = arith.mulf %124, %100 : vector<8x128xf32>
    %134 = arith.addf %132, %133 : vector<8x128xf32>
    %135 = vector.broadcast %102 : i32 to vector<8x1xi32>
    %136 = arith.cmpi slt, %135, %3 : vector<8x1xi32>
    %cst_34 = arith.constant 0.000000e+00 : f32
    %137 = vector.shape_cast %136 : vector<8x1xi1> to vector<8x1xi1>
    %138 = vector.broadcast %137 : vector<8x1xi1> to vector<8x128xi1>
    %139 = vector.broadcast %cst_34 : f32 to vector<8x128xf32>
    %140 = arith.select %138, %134, %139 : vector<8x128xi1>, vector<8x128xf32>
    %141 = arith.index_cast %c2_i32 : i32 to index
    %c0_35 = arith.constant 0 : index
    %c0_36 = arith.constant 0 : index
    %142 = vector.load %arg7[%141, %c0_35, %c0_36] : memref<8x8x128xf32, #tpu.memory_space<vmem>>, vector<1x8x128xf32>
    %143 = vector.shape_cast %142 : vector<1x8x128xf32> to vector<8x128xf32>
    %144 = vector.shape_cast %140 : vector<8x128xf32> to vector<1x8x128xf32>
    tpu.vector_store %arg7[%141, %c0_35, %c0_36], %144 {strides = array<i32>} : memref<8x8x128xf32, #tpu.memory_space<vmem>>, vector<1x8x128xf32>,
    %145 = vector.shape_cast %136 : vector<8x1xi1> to vector<8x1xi1>
    %146 = vector.broadcast %145 : vector<8x1xi1> to vector<8x128xi1>
    %147 = arith.select %146, %134, %100 : vector<8x128xi1>, vector<8x128xf32>
    %c3_i32 = arith.constant 3 : i32
    %c8_i32_37 = arith.constant 8 : i32
    %148 = arith.muli %arg1, %c8_i32_37 : i32
    %149 = arith.addi %148, %c3_i32 : i32
    %150 = arith.index_cast %c3_i32 : i32 to index
    %c0_38 = arith.constant 0 : index
    %c0_39 = arith.constant 0 : index
    %151 = vector.load %arg2[%150, %c0_38, %c0_39] : memref<8x8x384xf32, #tpu.memory_space<vmem>>, vector<1x8x384xf32>
    %152 = vector.shape_cast %151 : vector<1x8x384xf32> to vector<8x384xf32>
    %cst_40 = arith.constant dense<0.000000e+00> : vector<8x384xf32>
    %153 = tpu.matmul %147, %4, %cst_40 {dimension_numbers = #tpu.dot_dimension_numbers<[1], [0], [0], [1], [0, 0, 1, 1], [], []>} : vector<8x128xf32>, vector<128x384xf32>, vector<8x384xf32> -> vector<8x384xf32>
    %154 = vector.broadcast %5 : vector<1x384xf32> to vector<8x384xf32>
    %155 = arith.addf %153, %154 : vector<8x384xf32>
    %156 = vector.extract_strided_slice %152 {offsets = [0, 0], sizes = [8, 128], strides = [1, 1]} : vector<8x384xf32> to vector<8x128xf32>
    %157 = vector.extract_strided_slice %155 {offsets = [0, 0], sizes = [8, 128], strides = [1, 1]} : vector<8x384xf32> to vector<8x128xf32>
    %158 = arith.addf %156, %157 : vector<8x128xf32>
    %159 = arith.negf %158 : vector<8x128xf32>
    %160 = math.exp %159 : vector<8x128xf32>
    %cst_41 = arith.constant 1.000000e+00 : f32
    %161 = vector.broadcast %cst_41 : f32 to vector<8x128xf32>
    %162 = arith.addf %161, %160 : vector<8x128xf32>
    %163 = arith.divf %161, %162 : vector<8x128xf32>
    %164 = vector.extract_strided_slice %152 {offsets = [0, 128], sizes = [8, 128], strides = [1, 1]} : vector<8x384xf32> to vector<8x128xf32>
    %165 = vector.extract_strided_slice %155 {offsets = [0, 128], sizes = [8, 128], strides = [1, 1]} : vector<8x384xf32> to vector<8x128xf32>
    %166 = arith.addf %164, %165 : vector<8x128xf32>
    %167 = arith.negf %166 : vector<8x128xf32>
    %168 = math.exp %167 : vector<8x128xf32>
    %cst_42 = arith.constant 1.000000e+00 : f32
    %169 = vector.broadcast %cst_42 : f32 to vector<8x128xf32>
    %170 = arith.addf %169, %168 : vector<8x128xf32>
    %171 = arith.divf %169, %170 : vector<8x128xf32>
    %172 = vector.extract_strided_slice %152 {offsets = [0, 256], sizes = [8, 128], strides = [1, 1]} : vector<8x384xf32> to vector<8x128xf32>
    %173 = vector.extract_strided_slice %155 {offsets = [0, 256], sizes = [8, 128], strides = [1, 1]} : vector<8x384xf32> to vector<8x128xf32>
    %174 = arith.mulf %163, %173 : vector<8x128xf32>
    %175 = arith.addf %172, %174 : vector<8x128xf32>
    %176 = math.tanh %175 : vector<8x128xf32>
    %cst_43 = arith.constant 1.000000e+00 : f32
    %177 = vector.broadcast %cst_43 : f32 to vector<8x128xf32>
    %178 = arith.subf %177, %171 : vector<8x128xf32>
    %179 = arith.mulf %178, %176 : vector<8x128xf32>
    %180 = arith.mulf %171, %147 : vector<8x128xf32>
    %181 = arith.addf %179, %180 : vector<8x128xf32>
    %182 = vector.broadcast %149 : i32 to vector<8x1xi32>
    %183 = arith.cmpi slt, %182, %3 : vector<8x1xi32>
    %cst_44 = arith.constant 0.000000e+00 : f32
    %184 = vector.shape_cast %183 : vector<8x1xi1> to vector<8x1xi1>
    %185 = vector.broadcast %184 : vector<8x1xi1> to vector<8x128xi1>
    %186 = vector.broadcast %cst_44 : f32 to vector<8x128xf32>
    %187 = arith.select %185, %181, %186 : vector<8x128xi1>, vector<8x128xf32>
    %188 = arith.index_cast %c3_i32 : i32 to index
    %c0_45 = arith.constant 0 : index
    %c0_46 = arith.constant 0 : index
    %189 = vector.load %arg7[%188, %c0_45, %c0_46] : memref<8x8x128xf32, #tpu.memory_space<vmem>>, vector<1x8x128xf32>
    %190 = vector.shape_cast %189 : vector<1x8x128xf32> to vector<8x128xf32>
    %191 = vector.shape_cast %187 : vector<8x128xf32> to vector<1x8x128xf32>
    tpu.vector_store %arg7[%188, %c0_45, %c0_46], %191 {strides = array<i32>} : memref<8x8x128xf32, #tpu.memory_space<vmem>>, vector<1x8x128xf32>,
    %192 = vector.shape_cast %183 : vector<8x1xi1> to vector<8x1xi1>
    %193 = vector.broadcast %192 : vector<8x1xi1> to vector<8x128xi1>
    %194 = arith.select %193, %181, %147 : vector<8x128xi1>, vector<8x128xf32>
    %c4_i32 = arith.constant 4 : i32
    %c8_i32_47 = arith.constant 8 : i32
    %195 = arith.muli %arg1, %c8_i32_47 : i32
    %196 = arith.addi %195, %c4_i32 : i32
    %197 = arith.index_cast %c4_i32 : i32 to index
    %c0_48 = arith.constant 0 : index
    %c0_49 = arith.constant 0 : index
    %198 = vector.load %arg2[%197, %c0_48, %c0_49] : memref<8x8x384xf32, #tpu.memory_space<vmem>>, vector<1x8x384xf32>
    %199 = vector.shape_cast %198 : vector<1x8x384xf32> to vector<8x384xf32>
    %cst_50 = arith.constant dense<0.000000e+00> : vector<8x384xf32>
    %200 = tpu.matmul %194, %4, %cst_50 {dimension_numbers = #tpu.dot_dimension_numbers<[1], [0], [0], [1], [0, 0, 1, 1], [], []>} : vector<8x128xf32>, vector<128x384xf32>, vector<8x384xf32> -> vector<8x384xf32>
    %201 = vector.broadcast %5 : vector<1x384xf32> to vector<8x384xf32>
    %202 = arith.addf %200, %201 : vector<8x384xf32>
    %203 = vector.extract_strided_slice %199 {offsets = [0, 0], sizes = [8, 128], strides = [1, 1]} : vector<8x384xf32> to vector<8x128xf32>
    %204 = vector.extract_strided_slice %202 {offsets = [0, 0], sizes = [8, 128], strides = [1, 1]} : vector<8x384xf32> to vector<8x128xf32>
    %205 = arith.addf %203, %204 : vector<8x128xf32>
    %206 = arith.negf %205 : vector<8x128xf32>
    %207 = math.exp %206 : vector<8x128xf32>
    %cst_51 = arith.constant 1.000000e+00 : f32
    %208 = vector.broadcast %cst_51 : f32 to vector<8x128xf32>
    %209 = arith.addf %208, %207 : vector<8x128xf32>
    %210 = arith.divf %208, %209 : vector<8x128xf32>
    %211 = vector.extract_strided_slice %199 {offsets = [0, 128], sizes = [8, 128], strides = [1, 1]} : vector<8x384xf32> to vector<8x128xf32>
    %212 = vector.extract_strided_slice %202 {offsets = [0, 128], sizes = [8, 128], strides = [1, 1]} : vector<8x384xf32> to vector<8x128xf32>
    %213 = arith.addf %211, %212 : vector<8x128xf32>
    %214 = arith.negf %213 : vector<8x128xf32>
    %215 = math.exp %214 : vector<8x128xf32>
    %cst_52 = arith.constant 1.000000e+00 : f32
    %216 = vector.broadcast %cst_52 : f32 to vector<8x128xf32>
    %217 = arith.addf %216, %215 : vector<8x128xf32>
    %218 = arith.divf %216, %217 : vector<8x128xf32>
    %219 = vector.extract_strided_slice %199 {offsets = [0, 256], sizes = [8, 128], strides = [1, 1]} : vector<8x384xf32> to vector<8x128xf32>
    %220 = vector.extract_strided_slice %202 {offsets = [0, 256], sizes = [8, 128], strides = [1, 1]} : vector<8x384xf32> to vector<8x128xf32>
    %221 = arith.mulf %210, %220 : vector<8x128xf32>
    %222 = arith.addf %219, %221 : vector<8x128xf32>
    %223 = math.tanh %222 : vector<8x128xf32>
    %cst_53 = arith.constant 1.000000e+00 : f32
    %224 = vector.broadcast %cst_53 : f32 to vector<8x128xf32>
    %225 = arith.subf %224, %218 : vector<8x128xf32>
    %226 = arith.mulf %225, %223 : vector<8x128xf32>
    %227 = arith.mulf %218, %194 : vector<8x128xf32>
    %228 = arith.addf %226, %227 : vector<8x128xf32>
    %229 = vector.broadcast %196 : i32 to vector<8x1xi32>
    %230 = arith.cmpi slt, %229, %3 : vector<8x1xi32>
    %cst_54 = arith.constant 0.000000e+00 : f32
    %231 = vector.shape_cast %230 : vector<8x1xi1> to vector<8x1xi1>
    %232 = vector.broadcast %231 : vector<8x1xi1> to vector<8x128xi1>
    %233 = vector.broadcast %cst_54 : f32 to vector<8x128xf32>
    %234 = arith.select %232, %228, %233 : vector<8x128xi1>, vector<8x128xf32>
    %235 = arith.index_cast %c4_i32 : i32 to index
    %c0_55 = arith.constant 0 : index
    %c0_56 = arith.constant 0 : index
    %236 = vector.load %arg7[%235, %c0_55, %c0_56] : memref<8x8x128xf32, #tpu.memory_space<vmem>>, vector<1x8x128xf32>
    %237 = vector.shape_cast %236 : vector<1x8x128xf32> to vector<8x128xf32>
    %238 = vector.shape_cast %234 : vector<8x128xf32> to vector<1x8x128xf32>
    tpu.vector_store %arg7[%235, %c0_55, %c0_56], %238 {strides = array<i32>} : memref<8x8x128xf32, #tpu.memory_space<vmem>>, vector<1x8x128xf32>,
    %239 = vector.shape_cast %230 : vector<8x1xi1> to vector<8x1xi1>
    %240 = vector.broadcast %239 : vector<8x1xi1> to vector<8x128xi1>
    %241 = arith.select %240, %228, %194 : vector<8x128xi1>, vector<8x128xf32>
    %c5_i32 = arith.constant 5 : i32
    %c8_i32_57 = arith.constant 8 : i32
    %242 = arith.muli %arg1, %c8_i32_57 : i32
    %243 = arith.addi %242, %c5_i32 : i32
    %244 = arith.index_cast %c5_i32 : i32 to index
    %c0_58 = arith.constant 0 : index
    %c0_59 = arith.constant 0 : index
    %245 = vector.load %arg2[%244, %c0_58, %c0_59] : memref<8x8x384xf32, #tpu.memory_space<vmem>>, vector<1x8x384xf32>
    %246 = vector.shape_cast %245 : vector<1x8x384xf32> to vector<8x384xf32>
    %cst_60 = arith.constant dense<0.000000e+00> : vector<8x384xf32>
    %247 = tpu.matmul %241, %4, %cst_60 {dimension_numbers = #tpu.dot_dimension_numbers<[1], [0], [0], [1], [0, 0, 1, 1], [], []>} : vector<8x128xf32>, vector<128x384xf32>, vector<8x384xf32> -> vector<8x384xf32>
    %248 = vector.broadcast %5 : vector<1x384xf32> to vector<8x384xf32>
    %249 = arith.addf %247, %248 : vector<8x384xf32>
    %250 = vector.extract_strided_slice %246 {offsets = [0, 0], sizes = [8, 128], strides = [1, 1]} : vector<8x384xf32> to vector<8x128xf32>
    %251 = vector.extract_strided_slice %249 {offsets = [0, 0], sizes = [8, 128], strides = [1, 1]} : vector<8x384xf32> to vector<8x128xf32>
    %252 = arith.addf %250, %251 : vector<8x128xf32>
    %253 = arith.negf %252 : vector<8x128xf32>
    %254 = math.exp %253 : vector<8x128xf32>
    %cst_61 = arith.constant 1.000000e+00 : f32
    %255 = vector.broadcast %cst_61 : f32 to vector<8x128xf32>
    %256 = arith.addf %255, %254 : vector<8x128xf32>
    %257 = arith.divf %255, %256 : vector<8x128xf32>
    %258 = vector.extract_strided_slice %246 {offsets = [0, 128], sizes = [8, 128], strides = [1, 1]} : vector<8x384xf32> to vector<8x128xf32>
    %259 = vector.extract_strided_slice %249 {offsets = [0, 128], sizes = [8, 128], strides = [1, 1]} : vector<8x384xf32> to vector<8x128xf32>
    %260 = arith.addf %258, %259 : vector<8x128xf32>
    %261 = arith.negf %260 : vector<8x128xf32>
    %262 = math.exp %261 : vector<8x128xf32>
    %cst_62 = arith.constant 1.000000e+00 : f32
    %263 = vector.broadcast %cst_62 : f32 to vector<8x128xf32>
    %264 = arith.addf %263, %262 : vector<8x128xf32>
    %265 = arith.divf %263, %264 : vector<8x128xf32>
    %266 = vector.extract_strided_slice %246 {offsets = [0, 256], sizes = [8, 128], strides = [1, 1]} : vector<8x384xf32> to vector<8x128xf32>
    %267 = vector.extract_strided_slice %249 {offsets = [0, 256], sizes = [8, 128], strides = [1, 1]} : vector<8x384xf32> to vector<8x128xf32>
    %268 = arith.mulf %257, %267 : vector<8x128xf32>
    %269 = arith.addf %266, %268 : vector<8x128xf32>
    %270 = math.tanh %269 : vector<8x128xf32>
    %cst_63 = arith.constant 1.000000e+00 : f32
    %271 = vector.broadcast %cst_63 : f32 to vector<8x128xf32>
    %272 = arith.subf %271, %265 : vector<8x128xf32>
    %273 = arith.mulf %272, %270 : vector<8x128xf32>
    %274 = arith.mulf %265, %241 : vector<8x128xf32>
    %275 = arith.addf %273, %274 : vector<8x128xf32>
    %276 = vector.broadcast %243 : i32 to vector<8x1xi32>
    %277 = arith.cmpi slt, %276, %3 : vector<8x1xi32>
    %cst_64 = arith.constant 0.000000e+00 : f32
    %278 = vector.shape_cast %277 : vector<8x1xi1> to vector<8x1xi1>
    %279 = vector.broadcast %278 : vector<8x1xi1> to vector<8x128xi1>
    %280 = vector.broadcast %cst_64 : f32 to vector<8x128xf32>
    %281 = arith.select %279, %275, %280 : vector<8x128xi1>, vector<8x128xf32>
    %282 = arith.index_cast %c5_i32 : i32 to index
    %c0_65 = arith.constant 0 : index
    %c0_66 = arith.constant 0 : index
    %283 = vector.load %arg7[%282, %c0_65, %c0_66] : memref<8x8x128xf32, #tpu.memory_space<vmem>>, vector<1x8x128xf32>
    %284 = vector.shape_cast %283 : vector<1x8x128xf32> to vector<8x128xf32>
    %285 = vector.shape_cast %281 : vector<8x128xf32> to vector<1x8x128xf32>
    tpu.vector_store %arg7[%282, %c0_65, %c0_66], %285 {strides = array<i32>} : memref<8x8x128xf32, #tpu.memory_space<vmem>>, vector<1x8x128xf32>,
    %286 = vector.shape_cast %277 : vector<8x1xi1> to vector<8x1xi1>
    %287 = vector.broadcast %286 : vector<8x1xi1> to vector<8x128xi1>
    %288 = arith.select %287, %275, %241 : vector<8x128xi1>, vector<8x128xf32>
    %c6_i32 = arith.constant 6 : i32
    %c8_i32_67 = arith.constant 8 : i32
    %289 = arith.muli %arg1, %c8_i32_67 : i32
    %290 = arith.addi %289, %c6_i32 : i32
    %291 = arith.index_cast %c6_i32 : i32 to index
    %c0_68 = arith.constant 0 : index
    %c0_69 = arith.constant 0 : index
    %292 = vector.load %arg2[%291, %c0_68, %c0_69] : memref<8x8x384xf32, #tpu.memory_space<vmem>>, vector<1x8x384xf32>
    %293 = vector.shape_cast %292 : vector<1x8x384xf32> to vector<8x384xf32>
    %cst_70 = arith.constant dense<0.000000e+00> : vector<8x384xf32>
    %294 = tpu.matmul %288, %4, %cst_70 {dimension_numbers = #tpu.dot_dimension_numbers<[1], [0], [0], [1], [0, 0, 1, 1], [], []>} : vector<8x128xf32>, vector<128x384xf32>, vector<8x384xf32> -> vector<8x384xf32>
    %295 = vector.broadcast %5 : vector<1x384xf32> to vector<8x384xf32>
    %296 = arith.addf %294, %295 : vector<8x384xf32>
    %297 = vector.extract_strided_slice %293 {offsets = [0, 0], sizes = [8, 128], strides = [1, 1]} : vector<8x384xf32> to vector<8x128xf32>
    %298 = vector.extract_strided_slice %296 {offsets = [0, 0], sizes = [8, 128], strides = [1, 1]} : vector<8x384xf32> to vector<8x128xf32>
    %299 = arith.addf %297, %298 : vector<8x128xf32>
    %300 = arith.negf %299 : vector<8x128xf32>
    %301 = math.exp %300 : vector<8x128xf32>
    %cst_71 = arith.constant 1.000000e+00 : f32
    %302 = vector.broadcast %cst_71 : f32 to vector<8x128xf32>
    %303 = arith.addf %302, %301 : vector<8x128xf32>
    %304 = arith.divf %302, %303 : vector<8x128xf32>
    %305 = vector.extract_strided_slice %293 {offsets = [0, 128], sizes = [8, 128], strides = [1, 1]} : vector<8x384xf32> to vector<8x128xf32>
    %306 = vector.extract_strided_slice %296 {offsets = [0, 128], sizes = [8, 128], strides = [1, 1]} : vector<8x384xf32> to vector<8x128xf32>
    %307 = arith.addf %305, %306 : vector<8x128xf32>
    %308 = arith.negf %307 : vector<8x128xf32>
    %309 = math.exp %308 : vector<8x128xf32>
    %cst_72 = arith.constant 1.000000e+00 : f32
    %310 = vector.broadcast %cst_72 : f32 to vector<8x128xf32>
    %311 = arith.addf %310, %309 : vector<8x128xf32>
    %312 = arith.divf %310, %311 : vector<8x128xf32>
    %313 = vector.extract_strided_slice %293 {offsets = [0, 256], sizes = [8, 128], strides = [1, 1]} : vector<8x384xf32> to vector<8x128xf32>
    %314 = vector.extract_strided_slice %296 {offsets = [0, 256], sizes = [8, 128], strides = [1, 1]} : vector<8x384xf32> to vector<8x128xf32>
    %315 = arith.mulf %304, %314 : vector<8x128xf32>
    %316 = arith.addf %313, %315 : vector<8x128xf32>
    %317 = math.tanh %316 : vector<8x128xf32>
    %cst_73 = arith.constant 1.000000e+00 : f32
    %318 = vector.broadcast %cst_73 : f32 to vector<8x128xf32>
    %319 = arith.subf %318, %312 : vector<8x128xf32>
    %320 = arith.mulf %319, %317 : vector<8x128xf32>
    %321 = arith.mulf %312, %288 : vector<8x128xf32>
    %322 = arith.addf %320, %321 : vector<8x128xf32>
    %323 = vector.broadcast %290 : i32 to vector<8x1xi32>
    %324 = arith.cmpi slt, %323, %3 : vector<8x1xi32>
    %cst_74 = arith.constant 0.000000e+00 : f32
    %325 = vector.shape_cast %324 : vector<8x1xi1> to vector<8x1xi1>
    %326 = vector.broadcast %325 : vector<8x1xi1> to vector<8x128xi1>
    %327 = vector.broadcast %cst_74 : f32 to vector<8x128xf32>
    %328 = arith.select %326, %322, %327 : vector<8x128xi1>, vector<8x128xf32>
    %329 = arith.index_cast %c6_i32 : i32 to index
    %c0_75 = arith.constant 0 : index
    %c0_76 = arith.constant 0 : index
    %330 = vector.load %arg7[%329, %c0_75, %c0_76] : memref<8x8x128xf32, #tpu.memory_space<vmem>>, vector<1x8x128xf32>
    %331 = vector.shape_cast %330 : vector<1x8x128xf32> to vector<8x128xf32>
    %332 = vector.shape_cast %328 : vector<8x128xf32> to vector<1x8x128xf32>
    tpu.vector_store %arg7[%329, %c0_75, %c0_76], %332 {strides = array<i32>} : memref<8x8x128xf32, #tpu.memory_space<vmem>>, vector<1x8x128xf32>,
    %333 = vector.shape_cast %324 : vector<8x1xi1> to vector<8x1xi1>
    %334 = vector.broadcast %333 : vector<8x1xi1> to vector<8x128xi1>
    %335 = arith.select %334, %322, %288 : vector<8x128xi1>, vector<8x128xf32>
    %c7_i32 = arith.constant 7 : i32
    %c8_i32_77 = arith.constant 8 : i32
    %336 = arith.muli %arg1, %c8_i32_77 : i32
    %337 = arith.addi %336, %c7_i32 : i32
    %338 = arith.index_cast %c7_i32 : i32 to index
    %c0_78 = arith.constant 0 : index
    %c0_79 = arith.constant 0 : index
    %339 = vector.load %arg2[%338, %c0_78, %c0_79] : memref<8x8x384xf32, #tpu.memory_space<vmem>>, vector<1x8x384xf32>
    %340 = vector.shape_cast %339 : vector<1x8x384xf32> to vector<8x384xf32>
    %cst_80 = arith.constant dense<0.000000e+00> : vector<8x384xf32>
    %341 = tpu.matmul %335, %4, %cst_80 {dimension_numbers = #tpu.dot_dimension_numbers<[1], [0], [0], [1], [0, 0, 1, 1], [], []>} : vector<8x128xf32>, vector<128x384xf32>, vector<8x384xf32> -> vector<8x384xf32>
    %342 = vector.broadcast %5 : vector<1x384xf32> to vector<8x384xf32>
    %343 = arith.addf %341, %342 : vector<8x384xf32>
    %344 = vector.extract_strided_slice %340 {offsets = [0, 0], sizes = [8, 128], strides = [1, 1]} : vector<8x384xf32> to vector<8x128xf32>
    %345 = vector.extract_strided_slice %343 {offsets = [0, 0], sizes = [8, 128], strides = [1, 1]} : vector<8x384xf32> to vector<8x128xf32>
    %346 = arith.addf %344, %345 : vector<8x128xf32>
    %347 = arith.negf %346 : vector<8x128xf32>
    %348 = math.exp %347 : vector<8x128xf32>
    %cst_81 = arith.constant 1.000000e+00 : f32
    %349 = vector.broadcast %cst_81 : f32 to vector<8x128xf32>
    %350 = arith.addf %349, %348 : vector<8x128xf32>
    %351 = arith.divf %349, %350 : vector<8x128xf32>
    %352 = vector.extract_strided_slice %340 {offsets = [0, 128], sizes = [8, 128], strides = [1, 1]} : vector<8x384xf32> to vector<8x128xf32>
    %353 = vector.extract_strided_slice %343 {offsets = [0, 128], sizes = [8, 128], strides = [1, 1]} : vector<8x384xf32> to vector<8x128xf32>
    %354 = arith.addf %352, %353 : vector<8x128xf32>
    %355 = arith.negf %354 : vector<8x128xf32>
    %356 = math.exp %355 : vector<8x128xf32>
    %cst_82 = arith.constant 1.000000e+00 : f32
    %357 = vector.broadcast %cst_82 : f32 to vector<8x128xf32>
    %358 = arith.addf %357, %356 : vector<8x128xf32>
    %359 = arith.divf %357, %358 : vector<8x128xf32>
    %360 = vector.extract_strided_slice %340 {offsets = [0, 256], sizes = [8, 128], strides = [1, 1]} : vector<8x384xf32> to vector<8x128xf32>
    %361 = vector.extract_strided_slice %343 {offsets = [0, 256], sizes = [8, 128], strides = [1, 1]} : vector<8x384xf32> to vector<8x128xf32>
    %362 = arith.mulf %351, %361 : vector<8x128xf32>
    %363 = arith.addf %360, %362 : vector<8x128xf32>
    %364 = math.tanh %363 : vector<8x128xf32>
    %cst_83 = arith.constant 1.000000e+00 : f32
    %365 = vector.broadcast %cst_83 : f32 to vector<8x128xf32>
    %366 = arith.subf %365, %359 : vector<8x128xf32>
    %367 = arith.mulf %366, %364 : vector<8x128xf32>
    %368 = arith.mulf %359, %335 : vector<8x128xf32>
    %369 = arith.addf %367, %368 : vector<8x128xf32>
    %370 = vector.broadcast %337 : i32 to vector<8x1xi32>
    %371 = arith.cmpi slt, %370, %3 : vector<8x1xi32>
    %cst_84 = arith.constant 0.000000e+00 : f32
    %372 = vector.shape_cast %371 : vector<8x1xi1> to vector<8x1xi1>
    %373 = vector.broadcast %372 : vector<8x1xi1> to vector<8x128xi1>
    %374 = vector.broadcast %cst_84 : f32 to vector<8x128xf32>
    %375 = arith.select %373, %369, %374 : vector<8x128xi1>, vector<8x128xf32>
    %376 = arith.index_cast %c7_i32 : i32 to index
    %c0_85 = arith.constant 0 : index
    %c0_86 = arith.constant 0 : index
    %377 = vector.load %arg7[%376, %c0_85, %c0_86] : memref<8x8x128xf32, #tpu.memory_space<vmem>>, vector<1x8x128xf32>
    %378 = vector.shape_cast %377 : vector<1x8x128xf32> to vector<8x128xf32>
    %379 = vector.shape_cast %375 : vector<8x128xf32> to vector<1x8x128xf32>
    tpu.vector_store %arg7[%376, %c0_85, %c0_86], %379 {strides = array<i32>} : memref<8x8x128xf32, #tpu.memory_space<vmem>>, vector<1x8x128xf32>,
    %380 = vector.shape_cast %371 : vector<8x1xi1> to vector<8x1xi1>
    %381 = vector.broadcast %380 : vector<8x1xi1> to vector<8x128xi1>
    %382 = arith.select %381, %369, %335 : vector<8x128xi1>, vector<8x128xf32>
    %c8_i32_87 = arith.constant 8 : i32
    %c0_88 = arith.constant 0 : index
    %c0_89 = arith.constant 0 : index
    %383 = vector.load %arg8[%c0_88, %c0_89] : memref<8x128xf32, #tpu.memory_space<vmem>>, vector<8x128xf32>
    tpu.vector_store %arg8[%c0_88, %c0_89], %382 {strides = array<i32>} : memref<8x128xf32, #tpu.memory_space<vmem>>, vector<8x128xf32>,
    return
  }
  func.func @transform_0(%arg0: i32, %arg1: i32) -> (i32, i32, i32) {
    %c0_i32 = arith.constant 0 : i32
    %c0_i32_0 = arith.constant 0 : i32
    return %arg1, %arg0, %c0_i32 : i32, i32, i32
  }
  func.func @transform_1(%arg0: i32, %arg1: i32) -> (i32, i32) {
    %c0_i32 = arith.constant 0 : i32
    %c0_i32_0 = arith.constant 0 : i32
    return %arg0, %c0_i32 : i32, i32
  }
  func.func @transform_2(%arg0: i32, %arg1: i32) -> (i32, i32) {
    %c0_i32 = arith.constant 0 : i32
    %c0_i32_0 = arith.constant 0 : i32
    %c0_i32_1 = arith.constant 0 : i32
    return %c0_i32, %c0_i32_0 : i32, i32
  }
  func.func @transform_3(%arg0: i32, %arg1: i32) -> (i32, i32) {
    %c0_i32 = arith.constant 0 : i32
    %c0_i32_0 = arith.constant 0 : i32
    %c0_i32_1 = arith.constant 0 : i32
    return %c0_i32, %c0_i32_0 : i32, i32
  }
  func.func @transform_4(%arg0: i32, %arg1: i32) -> (i32, i32) {
    %c0_i32 = arith.constant 0 : i32
    %c0_i32_0 = arith.constant 0 : i32
    %c0_i32_1 = arith.constant 0 : i32
    return %c0_i32, %c0_i32_0 : i32, i32
  }
  func.func @transform_5(%arg0: i32, %arg1: i32) -> (i32, i32, i32) {
    %c0_i32 = arith.constant 0 : i32
    %c0_i32_0 = arith.constant 0 : i32
    return %arg1, %arg0, %c0_i32 : i32, i32, i32
  }
}

</mosaic_0001>

<llo_original>
// kernel: tpu_custom_call.1
$region0: #{tpu_custom_call.1}
  #allocation0 [shape = 'u32[]', space=smem, size = 0x4, offset = 0x4, fixed_abs, tag = 'smem constant byte address 0x4 - core index']
  #allocation1 [shape = 'u32[72,128]{1,0:T(1,128)}', space=vmem, size = 0x9000, scoped, tag = 'internal scratch']
  #allocation2 [shape = 'f32[8,128]{1,0:T(8,128)}', space=vmem, size = 0x1000, scoped, tag = 'scratch operand']
  %s0 = inlined_call_operand.hbm [shape: f32[8,8,384], index: 0, kind: input, shape index: {}]
  %s1 = inlined_call_operand.vmem [shape: s32[8,1], index: 1, kind: input, shape index: {}]
  %s2 = inlined_call_operand.hbm [shape: f32[128,384], index: 2, kind: input, shape index: {}]
  %s3 = inlined_call_operand.vmem [shape: f32[1,384], index: 3, kind: input, shape index: {}]
  %s4 = inlined_call_operand.vmem [shape: f32[1,128], index: 4, kind: input, shape index: {}]
  %s5 = inlined_call_operand.hbm [shape: f32[8,8,128], index: 5, kind: output, shape index: {}]
  %s6 = sld [smem:[#allocation0]]
  $region42: #{tpu_custom_call.1} parent=0
    _
  %s8 = ssub.s32 1, %s6
  %s9 = scalar_select 0, %s8, %s6
  $region1: #{tpu_custom_call.1} parent=0
    #allocation3 [shape = 'u8[98304]{0}', space=vmem, size = 0x18000, scoped, tag = 'input window, operand 0, single buffered']
    #allocation4 [shape = 's32[1]{0}', space=sflag, size = 0x4, scoped, tag = 'scoped memory for tpu_custom_call.1']
    #allocation5 [shape = 's32[1]{0}', space=sflag, size = 0x4, scoped, tag = 'scoped memory for tpu_custom_call.1']
    #allocation6 [shape = 'u8[196608]{0}', space=vmem, size = 0x30000, scoped, tag = 'input window, operand 2, single buffered']
    #allocation7 [shape = 's32[1]{0}', space=sflag, size = 0x4, scoped, tag = 'scoped memory for tpu_custom_call.1']
    #allocation8 [shape = 'u8[32768]{0}', space=vmem, size = 0x8000, scoped, tag = 'output window, operand 0, single buffered']
    %10 = vsyncpa [#allocation4], 0
    %11 = vsyncpa [#allocation7], 0
    %12 = vsyncpa [#allocation5], 0
    // Predicated region
    $region2: #{tpu_custom_call.1} parent=1 // pred_check
      _
    $region3: #{tpu_custom_call.1} parent=1 // pred_check_branch
      %14 = sbr.rel (0) target = $region5
    $region4: #{tpu_custom_call.1} parent=1 // pred_region
      %16 = vsyncadd [#allocation4], 0
      %s17 = sshll.u32 %s0, 4
      %s18 = int_to_ptr.hbm [resolvable:$true] %s17
      %s19 = sshll.u32 [#allocation3], 4
      %s20 = int_to_ptr.vmem [resolvable:$true] %s19
      %25 = dma.hbm_to_vmem [thread:$0]  %s18, 3072, %s20, [#allocation4], 384, 384, 24
    $region5: #{tpu_custom_call.1} parent=1 // pred_fallthru
      _
    // Predicated region
    $region6: #{tpu_custom_call.1} parent=1 // pred_check
      _
    $region7: #{tpu_custom_call.1} parent=1 // pred_check_branch
      %27 = sbr.rel (0) target = $region9
    $region8: #{tpu_custom_call.1} parent=1 // pred_region
      _
    $region9: #{tpu_custom_call.1} parent=1 // pred_fallthru
      _
    // Predicated region
    $region10: #{tpu_custom_call.1} parent=1 // pred_check
      _
    $region11: #{tpu_custom_call.1} parent=1 // pred_check_branch
      %29 = sbr.rel (0) target = $region13
    $region12: #{tpu_custom_call.1} parent=1 // pred_region
      %31 = vsyncadd [#allocation7], 0
      %s32 = sshll.u32 %s2, 4
      %s33 = int_to_ptr.hbm [resolvable:$true] %s32
      %s34 = sshll.u32 [#allocation6], 4
      %s35 = int_to_ptr.vmem [resolvable:$true] %s34
      %40 = dma.hbm_to_vmem [thread:$0]  %s33, 6144, %s35, [#allocation7], 384, 384, 24
    $region13: #{tpu_custom_call.1} parent=1 // pred_fallthru
      _
    // Predicated region
    $region14: #{tpu_custom_call.1} parent=1 // pred_check
      _
    $region15: #{tpu_custom_call.1} parent=1 // pred_check_branch
      %42 = sbr.rel (0) target = $region17
    $region16: #{tpu_custom_call.1} parent=1 // pred_region
      _
    $region17: #{tpu_custom_call.1} parent=1 // pred_fallthru
      _
    // Predicated region
    $region18: #{tpu_custom_call.1} parent=1 // pred_check
      _
    $region19: #{tpu_custom_call.1} parent=1 // pred_check_branch
      %44 = sbr.rel (0) target = $region21
    $region20: #{tpu_custom_call.1} parent=1 // pred_region
      _
    $region21: #{tpu_custom_call.1} parent=1 // pred_fallthru
      _
    // Predicated region
    $region22: #{tpu_custom_call.1} parent=1 // pred_check
      _
    $region23: #{tpu_custom_call.1} parent=1 // pred_check_branch
      %46 = sbr.rel (0) target = $region25
    $region24: #{tpu_custom_call.1} parent=1 // pred_region
      %48 = dma.done [#allocation4], 3072
    $region25: #{tpu_custom_call.1} parent=1 // pred_fallthru
      _
    // Predicated region
    $region26: #{tpu_custom_call.1} parent=1 // pred_check
      _
    $region27: #{tpu_custom_call.1} parent=1 // pred_check_branch
      %50 = sbr.rel (0) target = $region29
    $region28: #{tpu_custom_call.1} parent=1 // pred_region
      %52 = dma.done [#allocation7], 6144
    $region29: #{tpu_custom_call.1} parent=1 // pred_fallthru
      _
    %p53 = scmp.eq.s32.totalorder 0, 0
    // Predicated region
    $region30: #{tpu_custom_call.1} parent=1 // pred_check
      %p54 = pneg %p53
    $region31: #{tpu_custom_call.1} parent=1 // pred_check_branch
      %56 = sbr.rel (%p54) target = $region33
    $region32: #{tpu_custom_call.1} parent=1 // pred_region
      %v57 = vld [vmem:[%s4] sm:$0x1]
      %v59 = vperm.slane %v57, 0
      %61 = vst [vmem:[#allocation2] sm:$0xff] %v59
    $region33: #{tpu_custom_call.1} parent=1 // pred_fallthru
      _
    %v62 = vld [vmem:[%s1] sm:$0xff]
    %v63 = vld [vmem:[#allocation6] sm:$0xff]
    %v64 = vld [vmem:[#allocation6 + $0x8] sm:$0xff]
    %v65 = vld [vmem:[#allocation6 + $0x10] sm:$0xff]
    %v66 = vld [vmem:[#allocation6 + $0x18] sm:$0xff]
    %v67 = vld [vmem:[#allocation6 + $0x20] sm:$0xff]
    %v68 = vld [vmem:[#allocation6 + $0x28] sm:$0xff]
    %v69 = vld [vmem:[#allocation6 + $0x30] sm:$0xff]
    %v70 = vld [vmem:[#allocation6 + $0x38] sm:$0xff]
    %v71 = vld [vmem:[#allocation6 + $0x40] sm:$0xff]
    %v72 = vld [vmem:[#allocation6 + $0x48] sm:$0xff]
    %v73 = vld [vmem:[#allocation6 + $0x50] sm:$0xff]
    %v74 = vld [vmem:[#allocation6 + $0x58] sm:$0xff]
    %v75 = vld [vmem:[#allocation6 + $0x60] sm:$0xff]
    %v76 = vld [vmem:[#allocation6 + $0x68] sm:$0xff]
    %v77 = vld [vmem:[#allocation6 + $0x70] sm:$0xff]
    %v78 = vld [vmem:[#allocation6 + $0x78] sm:$0xff]
    %v79 = vld [vmem:[#allocation6 + $0x80] sm:$0xff]
    %v80 = vld [vmem:[#allocation6 + $0x88] sm:$0xff]
    %v81 = vld [vmem:[#allocation6 + $0x90] sm:$0xff]
    %v82 = vld [vmem:[#allocation6 + $0x98] sm:$0xff]
    %v83 = vld [vmem:[#allocation6 + $0xa0] sm:$0xff]
    %v84 = vld [vmem:[#allocation6 + $0xa8] sm:$0xff]
    %v85 = vld [vmem:[#allocation6 + $0xb0] sm:$0xff]
    %v86 = vld [vmem:[#allocation6 + $0xb8] sm:$0xff]
    %v87 = vld [vmem:[#allocation6 + $0xc0] sm:$0xff]
    %v88 = vld [vmem:[#allocation6 + $0xc8] sm:$0xff]
    %v89 = vld [vmem:[#allocation6 + $0xd0] sm:$0xff]
    %v90 = vld [vmem:[#allocation6 + $0xd8] sm:$0xff]
    %v91 = vld [vmem:[#allocation6 + $0xe0] sm:$0xff]
    %v92 = vld [vmem:[#allocation6 + $0xe8] sm:$0xff]
    %v93 = vld [vmem:[#allocation6 + $0xf0] sm:$0xff]
    %v94 = vld [vmem:[#allocation6 + $0xf8] sm:$0xff]
    %v95 = vld [vmem:[#allocation6 + $0x100] sm:$0xff]
    %v96 = vld [vmem:[#allocation6 + $0x108] sm:$0xff]
    %v97 = vld [vmem:[#allocation6 + $0x110] sm:$0xff]
    %v98 = vld [vmem:[#allocation6 + $0x118] sm:$0xff]
    %v99 = vld [vmem:[#allocation6 + $0x120] sm:$0xff]
    %v100 = vld [vmem:[#allocation6 + $0x128] sm:$0xff]
    %v101 = vld [vmem:[#allocation6 + $0x130] sm:$0xff]
    %v102 = vld [vmem:[#allocation6 + $0x138] sm:$0xff]
    %v103 = vld [vmem:[#allocation6 + $0x140] sm:$0xff]
    %v104 = vld [vmem:[#allocation6 + $0x148] sm:$0xff]
    %v105 = vld [vmem:[#allocation6 + $0x150] sm:$0xff]
    %v106 = vld [vmem:[#allocation6 + $0x158] sm:$0xff]
    %v107 = vld [vmem:[#allocation6 + $0x160] sm:$0xff]
    %v108 = vld [vmem:[#allocation6 + $0x168] sm:$0xff]
    %v109 = vld [vmem:[#allocation6 + $0x170] sm:$0xff]
    %v110 = vld [vmem:[#allocation6 + $0x178] sm:$0xff]
    %v111 = vld [vmem:[%s3] sm:$0x7]
    %v112 = vld [vmem:[#allocation2] sm:$0xff]
    %s113 = smul.u32 0, 8
    %v114 = vld [vmem:[#allocation3] sm:$0xff]
    %v115 = vld [vmem:[#allocation3 + $0x8] sm:$0xff]
    %v116 = vld [vmem:[#allocation3 + $0x10] sm:$0xff]
    %v118 = vperm.slane %v111, 0
    %v119 = vperm.slane %v111, 1
    %v120 = vperm.slane %v111, 2
    %124 = vmatpush.msra.mxu0 %v108
    %125 = vmatpush.msra.mxu0 %v105
    %126 = vmatpush.msra.mxu0 %v102
    %127 = vmatpush.msra.mxu0 %v99
    %128 = vmatpush.msra.mxu0 %v96
    %129 = vmatpush.msra.mxu0 %v93
    %130 = vmatpush.msra.mxu0 %v90
    %131 = vmatpush.msra.mxu0 %v87
    %132 = vmatpush.msra.mxu0 %v84
    %133 = vmatpush.msra.mxu0 %v81
    %134 = vmatpush.msra.mxu0 %v78
    %135 = vmatpush.msra.mxu0 %v75
    %136 = vmatpush.msra.mxu0 %v72
    %137 = vmatpush.msra.mxu0 %v69
    %138 = vmatpush.msra.mxu0 %v66
    %139 = vmatpush.msra.mxu0 %v63
    %140 = vmatmul.f32.gmra.mxu0 %v112
    %v141 = vpop.f32.mrf.mxu0
    %v142 = vadd.f32 %v118, %v141
    %143 = vdwg.mxu0
    %144 = vmatpush.msra.mxu0 %v109
    %145 = vmatpush.msra.mxu0 %v106
    %146 = vmatpush.msra.mxu0 %v103
    %147 = vmatpush.msra.mxu0 %v100
    %148 = vmatpush.msra.mxu0 %v97
    %149 = vmatpush.msra.mxu0 %v94
    %150 = vmatpush.msra.mxu0 %v91
    %151 = vmatpush.msra.mxu0 %v88
    %152 = vmatpush.msra.mxu0 %v85
    %153 = vmatpush.msra.mxu0 %v82
    %154 = vmatpush.msra.mxu0 %v79
    %155 = vmatpush.msra.mxu0 %v76
    %156 = vmatpush.msra.mxu0 %v73
    %157 = vmatpush.msra.mxu0 %v70
    %158 = vmatpush.msra.mxu0 %v67
    %159 = vmatpush.msra.mxu0 %v64
    %160 = vmatmul.f32.gmra.mxu0 %v112
    %v161 = vpop.f32.mrf.mxu0
    %v162 = vadd.f32 %v119, %v161
    %163 = vdwg.mxu0
    %164 = vmatpush.msra.mxu0 %v110
    %165 = vmatpush.msra.mxu0 %v107
    %166 = vmatpush.msra.mxu0 %v104
    %167 = vmatpush.msra.mxu0 %v101
    %168 = vmatpush.msra.mxu0 %v98
    %169 = vmatpush.msra.mxu0 %v95
    %170 = vmatpush.msra.mxu0 %v92
    %171 = vmatpush.msra.mxu0 %v89
    %172 = vmatpush.msra.mxu0 %v86
    %173 = vmatpush.msra.mxu0 %v83
    %174 = vmatpush.msra.mxu0 %v80
    %175 = vmatpush.msra.mxu0 %v77
    %176 = vmatpush.msra.mxu0 %v74
    %177 = vmatpush.msra.mxu0 %v71
    %178 = vmatpush.msra.mxu0 %v68
    %179 = vmatpush.msra.mxu0 %v65
    %180 = vmatmul.f32.gmra.mxu0 %v112
    %v181 = vpop.f32.mrf.mxu0
    %v182 = vadd.f32 %v120, %v181
    %183 = vdwg.mxu0
    %v184 = vadd.f32 %v114, %v142
    %v185 = vxor.u32 %v184, 2147483648
    %v186 = vmul.f32 %v185, 1.442695
    %v187 = vpow.pop %v186
    %v188 = vadd.f32 %v187, 1.0
    %v189 = vrcp.pop %v188
    %v190 = vmul.f32 %v188, %v189
    %v191 = vsub.f32 1.0, %v190
    %v192 = vmul.f32 %v189, %v191
    %v193 = vadd.f32 %v189, %v192
    %vm194 = vweird.f32 %v188
    %vm195 = vweird.f32 %v189
    %vm196 = vmor %vm194, %vm195
    %v197 = vsel %vm196, %v189, %v193
    %v198 = vand.u32 2147483647, %v188
    %vm199 = vcmp.eq.f32.partialorder %v198, 8.507059e+37
    %v200 = vand.u32 %v188, 2147483648
    %v201 = vor.u32 1.1754944e-38, %v200
    %v202 = vsel %vm199, %v201, %v197
    %v203 = vmul.f32 1.0, %v202
    %v204 = vadd.f32 %v115, %v162
    %v205 = vxor.u32 %v204, 2147483648
    %v206 = vmul.f32 %v205, 1.442695
    %v207 = vpow.pop %v206
    %v208 = vadd.f32 %v207, 1.0
    %v209 = vrcp.pop %v208
    %v210 = vmul.f32 %v208, %v209
    %v211 = vsub.f32 1.0, %v210
    %v212 = vmul.f32 %v209, %v211
    %v213 = vadd.f32 %v209, %v212
    %vm214 = vweird.f32 %v208
    %vm215 = vweird.f32 %v209
    %vm216 = vmor %vm214, %vm215
    %v217 = vsel %vm216, %v209, %v213
    %v218 = vand.u32 2147483647, %v208
    %vm219 = vcmp.eq.f32.partialorder %v218, 8.507059e+37
    %v220 = vand.u32 %v208, 2147483648
    %v221 = vor.u32 1.1754944e-38, %v220
    %v222 = vsel %vm219, %v221, %v217
    %v223 = vmul.f32 1.0, %v222
    %v224 = vmul.f32 %v203, %v182
    %v225 = vadd.f32 %v116, %v224
    %v226 = vtanh.pop %v225
    %v227 = vsub.f32 1.0, %v223
    %v228 = vmul.f32 %v227, %v226
    %v229 = vmul.f32 %v223, %v112
    %v230 = vadd.f32 %v228, %v229
    %v231 = vstv %s113
    %vm232 = vcmp.lt.s32.totalorder %v231, %v62
    %v233 = vsel %vm232, 1, 0
    %234 = vset.pattern.permute.xlu0 0
    %235 = vperm.xlu0 %234, %v233
    %v236 = vpop.permute.xlu0 %235
    %vm237 = vcmp.eq.s32.totalorder %v236, 1
    %v238 = vsel %vm237, %v230, 0.0
    %239 = vst [vmem:[#allocation8] sm:$0xff] %v238
    %v240 = vsel %vm237, %v230, %v112
    %s241 = sadd.s32 %s113, 1
    %s242 = scalar_lea.vmem [#allocation3], 24
    %v243 = vld [vmem:[%s242] sm:$0xff]
    %v244 = vld [vmem:[%s242 + $0x8] sm:$0xff]
    %v245 = vld [vmem:[%s242 + $0x10] sm:$0xff]
    %246 = vmatpush.msra.mxu0 %v108
    %247 = vmatpush.msra.mxu0 %v105
    %248 = vmatpush.msra.mxu0 %v102
    %249 = vmatpush.msra.mxu0 %v99
    %250 = vmatpush.msra.mxu0 %v96
    %251 = vmatpush.msra.mxu0 %v93
    %252 = vmatpush.msra.mxu0 %v90
    %253 = vmatpush.msra.mxu0 %v87
    %254 = vmatpush.msra.mxu0 %v84
    %255 = vmatpush.msra.mxu0 %v81
    %256 = vmatpush.msra.mxu0 %v78
    %257 = vmatpush.msra.mxu0 %v75
    %258 = vmatpush.msra.mxu0 %v72
    %259 = vmatpush.msra.mxu0 %v69
    %260 = vmatpush.msra.mxu0 %v66
    %261 = vmatpush.msra.mxu0 %v63
    %262 = vmatmul.f32.gmra.mxu0 %v240
    %v263 = vpop.f32.mrf.mxu0
    %v264 = vadd.f32 %v118, %v263
    %265 = vdwg.mxu0
    %266 = vmatpush.msra.mxu0 %v109
    %267 = vmatpush.msra.mxu0 %v106
    %268 = vmatpush.msra.mxu0 %v103
    %269 = vmatpush.msra.mxu0 %v100
    %270 = vmatpush.msra.mxu0 %v97
    %271 = vmatpush.msra.mxu0 %v94
    %272 = vmatpush.msra.mxu0 %v91
    %273 = vmatpush.msra.mxu0 %v88
    %274 = vmatpush.msra.mxu0 %v85
    %275 = vmatpush.msra.mxu0 %v82
    %276 = vmatpush.msra.mxu0 %v79
    %277 = vmatpush.msra.mxu0 %v76
    %278 = vmatpush.msra.mxu0 %v73
    %279 = vmatpush.msra.mxu0 %v70
    %280 = vmatpush.msra.mxu0 %v67
    %281 = vmatpush.msra.mxu0 %v64
    %282 = vmatmul.f32.gmra.mxu0 %v240
    %v283 = vpop.f32.mrf.mxu0
    %v284 = vadd.f32 %v119, %v283
    %285 = vdwg.mxu0
    %286 = vmatpush.msra.mxu0 %v110
    %287 = vmatpush.msra.mxu0 %v107
    %288 = vmatpush.msra.mxu0 %v104
    %289 = vmatpush.msra.mxu0 %v101
    %290 = vmatpush.msra.mxu0 %v98
    %291 = vmatpush.msra.mxu0 %v95
    %292 = vmatpush.msra.mxu0 %v92
    %293 = vmatpush.msra.mxu0 %v89
    %294 = vmatpush.msra.mxu0 %v86
    %295 = vmatpush.msra.mxu0 %v83
    %296 = vmatpush.msra.mxu0 %v80
    %297 = vmatpush.msra.mxu0 %v77
    %298 = vmatpush.msra.mxu0 %v74
    %299 = vmatpush.msra.mxu0 %v71
    %300 = vmatpush.msra.mxu0 %v68
    %301 = vmatpush.msra.mxu0 %v65
    %302 = vmatmul.f32.gmra.mxu0 %v240
    %v303 = vpop.f32.mrf.mxu0
    %v304 = vadd.f32 %v120, %v303
    %305 = vdwg.mxu0
    %v306 = vadd.f32 %v243, %v264
    %v307 = vxor.u32 %v306, 2147483648
    %v308 = vmul.f32 %v307, 1.442695
    %v309 = vpow.pop %v308
    %v310 = vadd.f32 %v309, 1.0
    %v311 = vrcp.pop %v310
    %v312 = vmul.f32 %v310, %v311
    %v313 = vsub.f32 1.0, %v312
    %v314 = vmul.f32 %v311, %v313
    %v315 = vadd.f32 %v311, %v314
    %vm316 = vweird.f32 %v310
    %vm317 = vweird.f32 %v311
    %vm318 = vmor %vm316, %vm317
    %v319 = vsel %vm318, %v311, %v315
    %v320 = vand.u32 2147483647, %v310
    %vm321 = vcmp.eq.f32.partialorder %v320, 8.507059e+37
    %v322 = vand.u32 %v310, 2147483648
    %v323 = vor.u32 1.1754944e-38, %v322
    %v324 = vsel %vm321, %v323, %v319
    %v325 = vmul.f32 1.0, %v324
    %v326 = vadd.f32 %v244, %v284
    %v327 = vxor.u32 %v326, 2147483648
    %v328 = vmul.f32 %v327, 1.442695
    %v329 = vpow.pop %v328
    %v330 = vadd.f32 %v329, 1.0
    %v331 = vrcp.pop %v330
    %v332 = vmul.f32 %v330, %v331
    %v333 = vsub.f32 1.0, %v332
    %v334 = vmul.f32 %v331, %v333
    %v335 = vadd.f32 %v331, %v334
    %vm336 = vweird.f32 %v330
    %vm337 = vweird.f32 %v331
    %vm338 = vmor %vm336, %vm337
    %v339 = vsel %vm338, %v331, %v335
    %v340 = vand.u32 2147483647, %v330
    %vm341 = vcmp.eq.f32.partialorder %v340, 8.507059e+37
    %v342 = vand.u32 %v330, 2147483648
    %v343 = vor.u32 1.1754944e-38, %v342
    %v344 = vsel %vm341, %v343, %v339
    %v345 = vmul.f32 1.0, %v344
    %v346 = vmul.f32 %v325, %v304
    %v347 = vadd.f32 %v245, %v346
    %v348 = vtanh.pop %v347
    %v349 = vsub.f32 1.0, %v345
    %v350 = vmul.f32 %v349, %v348
    %v351 = vmul.f32 %v345, %v240
    %v352 = vadd.f32 %v350, %v351
    %v353 = vstv %s241
    %vm354 = vcmp.lt.s32.totalorder %v353, %v62
    %v355 = vsel %vm354, 1, 0
    %356 = vset.pattern.permute.xlu0 0
    %357 = vperm.xlu0 %356, %v355
    %v358 = vpop.permute.xlu0 %357
    %vm359 = vcmp.eq.s32.totalorder %v358, 1
    %v360 = vsel %vm359, %v352, 0.0
    %s361 = scalar_lea.vmem [#allocation8], 8
    %362 = vst [vmem:[%s361] sm:$0xff] %v360
    %v363 = vsel %vm359, %v352, %v240
    %s364 = sadd.s32 %s113, 2
    %s365 = scalar_lea.vmem [#allocation3], 48
    %v366 = vld [vmem:[%s365] sm:$0xff]
    %v367 = vld [vmem:[%s365 + $0x8] sm:$0xff]
    %v368 = vld [vmem:[%s365 + $0x10] sm:$0xff]
    %369 = vmatpush.msra.mxu0 %v108
    %370 = vmatpush.msra.mxu0 %v105
    %371 = vmatpush.msra.mxu0 %v102
    %372 = vmatpush.msra.mxu0 %v99
    %373 = vmatpush.msra.mxu0 %v96
    %374 = vmatpush.msra.mxu0 %v93
    %375 = vmatpush.msra.mxu0 %v90
    %376 = vmatpush.msra.mxu0 %v87
    %377 = vmatpush.msra.mxu0 %v84
    %378 = vmatpush.msra.mxu0 %v81
    %379 = vmatpush.msra.mxu0 %v78
    %380 = vmatpush.msra.mxu0 %v75
    %381 = vmatpush.msra.mxu0 %v72
    %382 = vmatpush.msra.mxu0 %v69
    %383 = vmatpush.msra.mxu0 %v66
    %384 = vmatpush.msra.mxu0 %v63
    %385 = vmatmul.f32.gmra.mxu0 %v363
    %v386 = vpop.f32.mrf.mxu0
    %v387 = vadd.f32 %v118, %v386
    %388 = vdwg.mxu0
    %389 = vmatpush.msra.mxu0 %v109
    %390 = vmatpush.msra.mxu0 %v106
    %391 = vmatpush.msra.mxu0 %v103
    %392 = vmatpush.msra.mxu0 %v100
    %393 = vmatpush.msra.mxu0 %v97
    %394 = vmatpush.msra.mxu0 %v94
    %395 = vmatpush.msra.mxu0 %v91
    %396 = vmatpush.msra.mxu0 %v88
    %397 = vmatpush.msra.mxu0 %v85
    %398 = vmatpush.msra.mxu0 %v82
    %399 = vmatpush.msra.mxu0 %v79
    %400 = vmatpush.msra.mxu0 %v76
    %401 = vmatpush.msra.mxu0 %v73
    %402 = vmatpush.msra.mxu0 %v70
    %403 = vmatpush.msra.mxu0 %v67
    %404 = vmatpush.msra.mxu0 %v64
    %405 = vmatmul.f32.gmra.mxu0 %v363
    %v406 = vpop.f32.mrf.mxu0
    %v407 = vadd.f32 %v119, %v406
    %408 = vdwg.mxu0
    %409 = vmatpush.msra.mxu0 %v110
    %410 = vmatpush.msra.mxu0 %v107
    %411 = vmatpush.msra.mxu0 %v104
    %412 = vmatpush.msra.mxu0 %v101
    %413 = vmatpush.msra.mxu0 %v98
    %414 = vmatpush.msra.mxu0 %v95
    %415 = vmatpush.msra.mxu0 %v92
    %416 = vmatpush.msra.mxu0 %v89
    %417 = vmatpush.msra.mxu0 %v86
    %418 = vmatpush.msra.mxu0 %v83
    %419 = vmatpush.msra.mxu0 %v80
    %420 = vmatpush.msra.mxu0 %v77
    %421 = vmatpush.msra.mxu0 %v74
    %422 = vmatpush.msra.mxu0 %v71
    %423 = vmatpush.msra.mxu0 %v68
    %424 = vmatpush.msra.mxu0 %v65
    %425 = vmatmul.f32.gmra.mxu0 %v363
    %v426 = vpop.f32.mrf.mxu0
    %v427 = vadd.f32 %v120, %v426
    %428 = vdwg.mxu0
    %v429 = vadd.f32 %v366, %v387
    %v430 = vxor.u32 %v429, 2147483648
    %v431 = vmul.f32 %v430, 1.442695
    %v432 = vpow.pop %v431
    %v433 = vadd.f32 %v432, 1.0
    %v434 = vrcp.pop %v433
    %v435 = vmul.f32 %v433, %v434
    %v436 = vsub.f32 1.0, %v435
    %v437 = vmul.f32 %v434, %v436
    %v438 = vadd.f32 %v434, %v437
    %vm439 = vweird.f32 %v433
    %vm440 = vweird.f32 %v434
    %vm441 = vmor %vm439, %vm440
    %v442 = vsel %vm441, %v434, %v438
    %v443 = vand.u32 2147483647, %v433
    %vm444 = vcmp.eq.f32.partialorder %v443, 8.507059e+37
    %v445 = vand.u32 %v433, 2147483648
    %v446 = vor.u32 1.1754944e-38, %v445
    %v447 = vsel %vm444, %v446, %v442
    %v448 = vmul.f32 1.0, %v447
    %v449 = vadd.f32 %v367, %v407
    %v450 = vxor.u32 %v449, 2147483648
    %v451 = vmul.f32 %v450, 1.442695
    %v452 = vpow.pop %v451
    %v453 = vadd.f32 %v452, 1.0
    %v454 = vrcp.pop %v453
    %v455 = vmul.f32 %v453, %v454
    %v456 = vsub.f32 1.0, %v455
    %v457 = vmul.f32 %v454, %v456
    %v458 = vadd.f32 %v454, %v457
    %vm459 = vweird.f32 %v453
    %vm460 = vweird.f32 %v454
    %vm461 = vmor %vm459, %vm460
    %v462 = vsel %vm461, %v454, %v458
    %v463 = vand.u32 2147483647, %v453
    %vm464 = vcmp.eq.f32.partialorder %v463, 8.507059e+37
    %v465 = vand.u32 %v453, 2147483648
    %v466 = vor.u32 1.1754944e-38, %v465
    %v467 = vsel %vm464, %v466, %v462
    %v468 = vmul.f32 1.0, %v467
    %v469 = vmul.f32 %v448, %v427
    %v470 = vadd.f32 %v368, %v469
    %v471 = vtanh.pop %v470
    %v472 = vsub.f32 1.0, %v468
    %v473 = vmul.f32 %v472, %v471
    %v474 = vmul.f32 %v468, %v363
    %v475 = vadd.f32 %v473, %v474
    %v476 = vstv %s364
    %vm477 = vcmp.lt.s32.totalorder %v476, %v62
    %v478 = vsel %vm477, 1, 0
    %479 = vset.pattern.permute.xlu0 0
    %480 = vperm.xlu0 %479, %v478
    %v481 = vpop.permute.xlu0 %480
    %vm482 = vcmp.eq.s32.totalorder %v481, 1
    %v483 = vsel %vm482, %v475, 0.0
    %s484 = scalar_lea.vmem [#allocation8], 16
    %485 = vst [vmem:[%s484] sm:$0xff] %v483
    %v486 = vsel %vm482, %v475, %v363
    %s487 = sadd.s32 %s113, 3
    %s488 = scalar_lea.vmem [#allocation3], 72
    %v489 = vld [vmem:[%s488] sm:$0xff]
    %v490 = vld [vmem:[%s488 + $0x8] sm:$0xff]
    %v491 = vld [vmem:[%s488 + $0x10] sm:$0xff]
    %492 = vmatpush.msra.mxu0 %v108
    %493 = vmatpush.msra.mxu0 %v105
    %494 = vmatpush.msra.mxu0 %v102
    %495 = vmatpush.msra.mxu0 %v99
    %496 = vmatpush.msra.mxu0 %v96
    %497 = vmatpush.msra.mxu0 %v93
    %498 = vmatpush.msra.mxu0 %v90
    %499 = vmatpush.msra.mxu0 %v87
    %500 = vmatpush.msra.mxu0 %v84
    %501 = vmatpush.msra.mxu0 %v81
    %502 = vmatpush.msra.mxu0 %v78
    %503 = vmatpush.msra.mxu0 %v75
    %504 = vmatpush.msra.mxu0 %v72
    %505 = vmatpush.msra.mxu0 %v69
    %506 = vmatpush.msra.mxu0 %v66
    %507 = vmatpush.msra.mxu0 %v63
    %508 = vmatmul.f32.gmra.mxu0 %v486
    %v509 = vpop.f32.mrf.mxu0
    %v510 = vadd.f32 %v118, %v509
    %511 = vdwg.mxu0
    %512 = vmatpush.msra.mxu0 %v109
    %513 = vmatpush.msra.mxu0 %v106
    %514 = vmatpush.msra.mxu0 %v103
    %515 = vmatpush.msra.mxu0 %v100
    %516 = vmatpush.msra.mxu0 %v97
    %517 = vmatpush.msra.mxu0 %v94
    %518 = vmatpush.msra.mxu0 %v91
    %519 = vmatpush.msra.mxu0 %v88
    %520 = vmatpush.msra.mxu0 %v85
    %521 = vmatpush.msra.mxu0 %v82
    %522 = vmatpush.msra.mxu0 %v79
    %523 = vmatpush.msra.mxu0 %v76
    %524 = vmatpush.msra.mxu0 %v73
    %525 = vmatpush.msra.mxu0 %v70
    %526 = vmatpush.msra.mxu0 %v67
    %527 = vmatpush.msra.mxu0 %v64
    %528 = vmatmul.f32.gmra.mxu0 %v486
    %v529 = vpop.f32.mrf.mxu0
    %v530 = vadd.f32 %v119, %v529
    %531 = vdwg.mxu0
    %532 = vmatpush.msra.mxu0 %v110
    %533 = vmatpush.msra.mxu0 %v107
    %534 = vmatpush.msra.mxu0 %v104
    %535 = vmatpush.msra.mxu0 %v101
    %536 = vmatpush.msra.mxu0 %v98
    %537 = vmatpush.msra.mxu0 %v95
    %538 = vmatpush.msra.mxu0 %v92
    %539 = vmatpush.msra.mxu0 %v89
    %540 = vmatpush.msra.mxu0 %v86
    %541 = vmatpush.msra.mxu0 %v83
    %542 = vmatpush.msra.mxu0 %v80
    %543 = vmatpush.msra.mxu0 %v77
    %544 = vmatpush.msra.mxu0 %v74
    %545 = vmatpush.msra.mxu0 %v71
    %546 = vmatpush.msra.mxu0 %v68
    %547 = vmatpush.msra.mxu0 %v65
    %548 = vmatmul.f32.gmra.mxu0 %v486
    %v549 = vpop.f32.mrf.mxu0
    %v550 = vadd.f32 %v120, %v549
    %551 = vdwg.mxu0
    %v552 = vadd.f32 %v489, %v510
    %v553 = vxor.u32 %v552, 2147483648
    %v554 = vmul.f32 %v553, 1.442695
    %v555 = vpow.pop %v554
    %v556 = vadd.f32 %v555, 1.0
    %v557 = vrcp.pop %v556
    %v558 = vmul.f32 %v556, %v557
    %v559 = vsub.f32 1.0, %v558
    %v560 = vmul.f32 %v557, %v559
    %v561 = vadd.f32 %v557, %v560
    %vm562 = vweird.f32 %v556
    %vm563 = vweird.f32 %v557
    %vm564 = vmor %vm562, %vm563
    %v565 = vsel %vm564, %v557, %v561
    %v566 = vand.u32 2147483647, %v556
    %vm567 = vcmp.eq.f32.partialorder %v566, 8.507059e+37
    %v568 = vand.u32 %v556, 2147483648
    %v569 = vor.u32 1.1754944e-38, %v568
    %v570 = vsel %vm567, %v569, %v565
    %v571 = vmul.f32 1.0, %v570
    %v572 = vadd.f32 %v490, %v530
    %v573 = vxor.u32 %v572, 2147483648
    %v574 = vmul.f32 %v573, 1.442695
    %v575 = vpow.pop %v574
    %v576 = vadd.f32 %v575, 1.0
    %v577 = vrcp.pop %v576
    %v578 = vmul.f32 %v576, %v577
    %v579 = vsub.f32 1.0, %v578
    %v580 = vmul.f32 %v577, %v579
    %v581 = vadd.f32 %v577, %v580
    %vm582 = vweird.f32 %v576
    %vm583 = vweird.f32 %v577
    %vm584 = vmor %vm582, %vm583
    %v585 = vsel %vm584, %v577, %v581
    %v586 = vand.u32 2147483647, %v576
    %vm587 = vcmp.eq.f32.partialorder %v586, 8.507059e+37
    %v588 = vand.u32 %v576, 2147483648
    %v589 = vor.u32 1.1754944e-38, %v588
    %v590 = vsel %vm587, %v589, %v585
    %v591 = vmul.f32 1.0, %v590
    %v592 = vmul.f32 %v571, %v550
    %v593 = vadd.f32 %v491, %v592
    %v594 = vtanh.pop %v593
    %v595 = vsub.f32 1.0, %v591
    %v596 = vmul.f32 %v595, %v594
    %v597 = vmul.f32 %v591, %v486
    %v598 = vadd.f32 %v596, %v597
    %v599 = vstv %s487
    %vm600 = vcmp.lt.s32.totalorder %v599, %v62
    %v601 = vsel %vm600, 1, 0
    %602 = vset.pattern.permute.xlu0 0
    %603 = vperm.xlu0 %602, %v601
    %v604 = vpop.permute.xlu0 %603
    %vm605 = vcmp.eq.s32.totalorder %v604, 1
    %v606 = vsel %vm605, %v598, 0.0
    %s607 = scalar_lea.vmem [#allocation8], 24
    %608 = vst [vmem:[%s607] sm:$0xff] %v606
    %v609 = vsel %vm605, %v598, %v486
    %s610 = sadd.s32 %s113, 4
    %s611 = scalar_lea.vmem [#allocation3], 96
    %v612 = vld [vmem:[%s611] sm:$0xff]
    %v613 = vld [vmem:[%s611 + $0x8] sm:$0xff]
    %v614 = vld [vmem:[%s611 + $0x10] sm:$0xff]
    %615 = vmatpush.msra.mxu0 %v108
    %616 = vmatpush.msra.mxu0 %v105
    %617 = vmatpush.msra.mxu0 %v102
    %618 = vmatpush.msra.mxu0 %v99
    %619 = vmatpush.msra.mxu0 %v96
    %620 = vmatpush.msra.mxu0 %v93
    %621 = vmatpush.msra.mxu0 %v90
    %622 = vmatpush.msra.mxu0 %v87
    %623 = vmatpush.msra.mxu0 %v84
    %624 = vmatpush.msra.mxu0 %v81
    %625 = vmatpush.msra.mxu0 %v78
    %626 = vmatpush.msra.mxu0 %v75
    %627 = vmatpush.msra.mxu0 %v72
    %628 = vmatpush.msra.mxu0 %v69
    %629 = vmatpush.msra.mxu0 %v66
    %630 = vmatpush.msra.mxu0 %v63
    %631 = vmatmul.f32.gmra.mxu0 %v609
    %v632 = vpop.f32.mrf.mxu0
    %v633 = vadd.f32 %v118, %v632
    %634 = vdwg.mxu0
    %635 = vmatpush.msra.mxu0 %v109
    %636 = vmatpush.msra.mxu0 %v106
    %637 = vmatpush.msra.mxu0 %v103
    %638 = vmatpush.msra.mxu0 %v100
    %639 = vmatpush.msra.mxu0 %v97
    %640 = vmatpush.msra.mxu0 %v94
    %641 = vmatpush.msra.mxu0 %v91
    %642 = vmatpush.msra.mxu0 %v88
    %643 = vmatpush.msra.mxu0 %v85
    %644 = vmatpush.msra.mxu0 %v82
    %645 = vmatpush.msra.mxu0 %v79
    %646 = vmatpush.msra.mxu0 %v76
    %647 = vmatpush.msra.mxu0 %v73
    %648 = vmatpush.msra.mxu0 %v70
    %649 = vmatpush.msra.mxu0 %v67
    %650 = vmatpush.msra.mxu0 %v64
    %651 = vmatmul.f32.gmra.mxu0 %v609
    %v652 = vpop.f32.mrf.mxu0
    %v653 = vadd.f32 %v119, %v652
    %654 = vdwg.mxu0
    %655 = vmatpush.msra.mxu0 %v110
    %656 = vmatpush.msra.mxu0 %v107
    %657 = vmatpush.msra.mxu0 %v104
    %658 = vmatpush.msra.mxu0 %v101
    %659 = vmatpush.msra.mxu0 %v98
    %660 = vmatpush.msra.mxu0 %v95
    %661 = vmatpush.msra.mxu0 %v92
    %662 = vmatpush.msra.mxu0 %v89
    %663 = vmatpush.msra.mxu0 %v86
    %664 = vmatpush.msra.mxu0 %v83
    %665 = vmatpush.msra.mxu0 %v80
    %666 = vmatpush.msra.mxu0 %v77
    %667 = vmatpush.msra.mxu0 %v74
    %668 = vmatpush.msra.mxu0 %v71
    %669 = vmatpush.msra.mxu0 %v68
    %670 = vmatpush.msra.mxu0 %v65
    %671 = vmatmul.f32.gmra.mxu0 %v609
    %v672 = vpop.f32.mrf.mxu0
    %v673 = vadd.f32 %v120, %v672
    %674 = vdwg.mxu0
    %v675 = vadd.f32 %v612, %v633
    %v676 = vxor.u32 %v675, 2147483648
    %v677 = vmul.f32 %v676, 1.442695
    %v678 = vpow.pop %v677
    %v679 = vadd.f32 %v678, 1.0
    %v680 = vrcp.pop %v679
    %v681 = vmul.f32 %v679, %v680
    %v682 = vsub.f32 1.0, %v681
    %v683 = vmul.f32 %v680, %v682
    %v684 = vadd.f32 %v680, %v683
    %vm685 = vweird.f32 %v679
    %vm686 = vweird.f32 %v680
    %vm687 = vmor %vm685, %vm686
    %v688 = vsel %vm687, %v680, %v684
    %v689 = vand.u32 2147483647, %v679
    %vm690 = vcmp.eq.f32.partialorder %v689, 8.507059e+37
    %v691 = vand.u32 %v679, 2147483648
    %v692 = vor.u32 1.1754944e-38, %v691
    %v693 = vsel %vm690, %v692, %v688
    %v694 = vmul.f32 1.0, %v693
    %v695 = vadd.f32 %v613, %v653
    %v696 = vxor.u32 %v695, 2147483648
    %v697 = vmul.f32 %v696, 1.442695
    %v698 = vpow.pop %v697
    %v699 = vadd.f32 %v698, 1.0
    %v700 = vrcp.pop %v699
    %v701 = vmul.f32 %v699, %v700
    %v702 = vsub.f32 1.0, %v701
    %v703 = vmul.f32 %v700, %v702
    %v704 = vadd.f32 %v700, %v703
    %vm705 = vweird.f32 %v699
    %vm706 = vweird.f32 %v700
    %vm707 = vmor %vm705, %vm706
    %v708 = vsel %vm707, %v700, %v704
    %v709 = vand.u32 2147483647, %v699
    %vm710 = vcmp.eq.f32.partialorder %v709, 8.507059e+37
    %v711 = vand.u32 %v699, 2147483648
    %v712 = vor.u32 1.1754944e-38, %v711
    %v713 = vsel %vm710, %v712, %v708
    %v714 = vmul.f32 1.0, %v713
    %v715 = vmul.f32 %v694, %v673
    %v716 = vadd.f32 %v614, %v715
    %v717 = vtanh.pop %v716
    %v718 = vsub.f32 1.0, %v714
    %v719 = vmul.f32 %v718, %v717
    %v720 = vmul.f32 %v714, %v609
    %v721 = vadd.f32 %v719, %v720
    %v722 = vstv %s610
    %vm723 = vcmp.lt.s32.totalorder %v722, %v62
    %v724 = vsel %vm723, 1, 0
    %725 = vset.pattern.permute.xlu0 0
    %726 = vperm.xlu0 %725, %v724
    %v727 = vpop.permute.xlu0 %726
    %vm728 = vcmp.eq.s32.totalorder %v727, 1
    %v729 = vsel %vm728, %v721, 0.0
    %s730 = scalar_lea.vmem [#allocation8], 32
    %731 = vst [vmem:[%s730] sm:$0xff] %v729
    %v732 = vsel %vm728, %v721, %v609
    %s733 = sadd.s32 %s113, 5
    %s734 = scalar_lea.vmem [#allocation3], 120
    %v735 = vld [vmem:[%s734] sm:$0xff]
    %v736 = vld [vmem:[%s734 + $0x8] sm:$0xff]
    %v737 = vld [vmem:[%s734 + $0x10] sm:$0xff]
    %738 = vmatpush.msra.mxu0 %v108
    %739 = vmatpush.msra.mxu0 %v105
    %740 = vmatpush.msra.mxu0 %v102
    %741 = vmatpush.msra.mxu0 %v99
    %742 = vmatpush.msra.mxu0 %v96
    %743 = vmatpush.msra.mxu0 %v93
    %744 = vmatpush.msra.mxu0 %v90
    %745 = vmatpush.msra.mxu0 %v87
    %746 = vmatpush.msra.mxu0 %v84
    %747 = vmatpush.msra.mxu0 %v81
    %748 = vmatpush.msra.mxu0 %v78
    %749 = vmatpush.msra.mxu0 %v75
    %750 = vmatpush.msra.mxu0 %v72
    %751 = vmatpush.msra.mxu0 %v69
    %752 = vmatpush.msra.mxu0 %v66
    %753 = vmatpush.msra.mxu0 %v63
    %754 = vmatmul.f32.gmra.mxu0 %v732
    %v755 = vpop.f32.mrf.mxu0
    %v756 = vadd.f32 %v118, %v755
    %757 = vdwg.mxu0
    %758 = vmatpush.msra.mxu0 %v109
    %759 = vmatpush.msra.mxu0 %v106
    %760 = vmatpush.msra.mxu0 %v103
    %761 = vmatpush.msra.mxu0 %v100
    %762 = vmatpush.msra.mxu0 %v97
    %763 = vmatpush.msra.mxu0 %v94
    %764 = vmatpush.msra.mxu0 %v91
    %765 = vmatpush.msra.mxu0 %v88
    %766 = vmatpush.msra.mxu0 %v85
    %767 = vmatpush.msra.mxu0 %v82
    %768 = vmatpush.msra.mxu0 %v79
    %769 = vmatpush.msra.mxu0 %v76
    %770 = vmatpush.msra.mxu0 %v73
    %771 = vmatpush.msra.mxu0 %v70
    %772 = vmatpush.msra.mxu0 %v67
    %773 = vmatpush.msra.mxu0 %v64
    %774 = vmatmul.f32.gmra.mxu0 %v732
    %v775 = vpop.f32.mrf.mxu0
    %v776 = vadd.f32 %v119, %v775
    %777 = vdwg.mxu0
    %778 = vmatpush.msra.mxu0 %v110
    %779 = vmatpush.msra.mxu0 %v107
    %780 = vmatpush.msra.mxu0 %v104
    %781 = vmatpush.msra.mxu0 %v101
    %782 = vmatpush.msra.mxu0 %v98
    %783 = vmatpush.msra.mxu0 %v95
    %784 = vmatpush.msra.mxu0 %v92
    %785 = vmatpush.msra.mxu0 %v89
    %786 = vmatpush.msra.mxu0 %v86
    %787 = vmatpush.msra.mxu0 %v83
    %788 = vmatpush.msra.mxu0 %v80
    %789 = vmatpush.msra.mxu0 %v77
    %790 = vmatpush.msra.mxu0 %v74
    %791 = vmatpush.msra.mxu0 %v71
    %792 = vmatpush.msra.mxu0 %v68
    %793 = vmatpush.msra.mxu0 %v65
    %794 = vmatmul.f32.gmra.mxu0 %v732
    %v795 = vpop.f32.mrf.mxu0
    %v796 = vadd.f32 %v120, %v795
    %797 = vdwg.mxu0
    %v798 = vadd.f32 %v735, %v756
    %v799 = vxor.u32 %v798, 2147483648
    %v800 = vmul.f32 %v799, 1.442695
    %v801 = vpow.pop %v800
    %v802 = vadd.f32 %v801, 1.0
    %v803 = vrcp.pop %v802
    %v804 = vmul.f32 %v802, %v803
    %v805 = vsub.f32 1.0, %v804
    %v806 = vmul.f32 %v803, %v805
    %v807 = vadd.f32 %v803, %v806
    %vm808 = vweird.f32 %v802
    %vm809 = vweird.f32 %v803
    %vm810 = vmor %vm808, %vm809
    %v811 = vsel %vm810, %v803, %v807
    %v812 = vand.u32 2147483647, %v802
    %vm813 = vcmp.eq.f32.partialorder %v812, 8.507059e+37
    %v814 = vand.u32 %v802, 2147483648
    %v815 = vor.u32 1.1754944e-38, %v814
    %v816 = vsel %vm813, %v815, %v811
    %v817 = vmul.f32 1.0, %v816
    %v818 = vadd.f32 %v736, %v776
    %v819 = vxor.u32 %v818, 2147483648
    %v820 = vmul.f32 %v819, 1.442695
    %v821 = vpow.pop %v820
    %v822 = vadd.f32 %v821, 1.0
    %v823 = vrcp.pop %v822
    %v824 = vmul.f32 %v822, %v823
    %v825 = vsub.f32 1.0, %v824
    %v826 = vmul.f32 %v823, %v825
    %v827 = vadd.f32 %v823, %v826
    %vm828 = vweird.f32 %v822
    %vm829 = vweird.f32 %v823
    %vm830 = vmor %vm828, %vm829
    %v831 = vsel %vm830, %v823, %v827
    %v832 = vand.u32 2147483647, %v822
    %vm833 = vcmp.eq.f32.partialorder %v832, 8.507059e+37
    %v834 = vand.u32 %v822, 2147483648
    %v835 = vor.u32 1.1754944e-38, %v834
    %v836 = vsel %vm833, %v835, %v831
    %v837 = vmul.f32 1.0, %v836
    %v838 = vmul.f32 %v817, %v796
    %v839 = vadd.f32 %v737, %v838
    %v840 = vtanh.pop %v839
    %v841 = vsub.f32 1.0, %v837
    %v842 = vmul.f32 %v841, %v840
    %v843 = vmul.f32 %v837, %v732
    %v844 = vadd.f32 %v842, %v843
    %v845 = vstv %s733
    %vm846 = vcmp.lt.s32.totalorder %v845, %v62
    %v847 = vsel %vm846, 1, 0
    %848 = vset.pattern.permute.xlu0 0
    %849 = vperm.xlu0 %848, %v847
    %v850 = vpop.permute.xlu0 %849
    %vm851 = vcmp.eq.s32.totalorder %v850, 1
    %v852 = vsel %vm851, %v844, 0.0
    %s853 = scalar_lea.vmem [#allocation8], 40
    %854 = vst [vmem:[%s853] sm:$0xff] %v852
    %v855 = vsel %vm851, %v844, %v732
    %s856 = sadd.s32 %s113, 6
    %s857 = scalar_lea.vmem [#allocation3], 144
    %v858 = vld [vmem:[%s857] sm:$0xff]
    %v859 = vld [vmem:[%s857 + $0x8] sm:$0xff]
    %v860 = vld [vmem:[%s857 + $0x10] sm:$0xff]
    %861 = vmatpush.msra.mxu0 %v108
    %862 = vmatpush.msra.mxu0 %v105
    %863 = vmatpush.msra.mxu0 %v102
    %864 = vmatpush.msra.mxu0 %v99
    %865 = vmatpush.msra.mxu0 %v96
    %866 = vmatpush.msra.mxu0 %v93
    %867 = vmatpush.msra.mxu0 %v90
    %868 = vmatpush.msra.mxu0 %v87
    %869 = vmatpush.msra.mxu0 %v84
    %870 = vmatpush.msra.mxu0 %v81
    %871 = vmatpush.msra.mxu0 %v78
    %872 = vmatpush.msra.mxu0 %v75
    %873 = vmatpush.msra.mxu0 %v72
    %874 = vmatpush.msra.mxu0 %v69
    %875 = vmatpush.msra.mxu0 %v66
    %876 = vmatpush.msra.mxu0 %v63
    %877 = vmatmul.f32.gmra.mxu0 %v855
    %v878 = vpop.f32.mrf.mxu0
    %v879 = vadd.f32 %v118, %v878
    %880 = vdwg.mxu0
    %881 = vmatpush.msra.mxu0 %v109
    %882 = vmatpush.msra.mxu0 %v106
    %883 = vmatpush.msra.mxu0 %v103
    %884 = vmatpush.msra.mxu0 %v100
    %885 = vmatpush.msra.mxu0 %v97
    %886 = vmatpush.msra.mxu0 %v94
    %887 = vmatpush.msra.mxu0 %v91
    %888 = vmatpush.msra.mxu0 %v88
    %889 = vmatpush.msra.mxu0 %v85
    %890 = vmatpush.msra.mxu0 %v82
    %891 = vmatpush.msra.mxu0 %v79
    %892 = vmatpush.msra.mxu0 %v76
    %893 = vmatpush.msra.mxu0 %v73
    %894 = vmatpush.msra.mxu0 %v70
    %895 = vmatpush.msra.mxu0 %v67
    %896 = vmatpush.msra.mxu0 %v64
    %897 = vmatmul.f32.gmra.mxu0 %v855
    %v898 = vpop.f32.mrf.mxu0
    %v899 = vadd.f32 %v119, %v898
    %900 = vdwg.mxu0
    %901 = vmatpush.msra.mxu0 %v110
    %902 = vmatpush.msra.mxu0 %v107
    %903 = vmatpush.msra.mxu0 %v104
    %904 = vmatpush.msra.mxu0 %v101
    %905 = vmatpush.msra.mxu0 %v98
    %906 = vmatpush.msra.mxu0 %v95
    %907 = vmatpush.msra.mxu0 %v92
    %908 = vmatpush.msra.mxu0 %v89
    %909 = vmatpush.msra.mxu0 %v86
    %910 = vmatpush.msra.mxu0 %v83
    %911 = vmatpush.msra.mxu0 %v80
    %912 = vmatpush.msra.mxu0 %v77
    %913 = vmatpush.msra.mxu0 %v74
    %914 = vmatpush.msra.mxu0 %v71
    %915 = vmatpush.msra.mxu0 %v68
    %916 = vmatpush.msra.mxu0 %v65
    %917 = vmatmul.f32.gmra.mxu0 %v855
    %v918 = vpop.f32.mrf.mxu0
    %v919 = vadd.f32 %v120, %v918
    %920 = vdwg.mxu0
    %v921 = vadd.f32 %v858, %v879
    %v922 = vxor.u32 %v921, 2147483648
    %v923 = vmul.f32 %v922, 1.442695
    %v924 = vpow.pop %v923
    %v925 = vadd.f32 %v924, 1.0
    %v926 = vrcp.pop %v925
    %v927 = vmul.f32 %v925, %v926
    %v928 = vsub.f32 1.0, %v927
    %v929 = vmul.f32 %v926, %v928
    %v930 = vadd.f32 %v926, %v929
    %vm931 = vweird.f32 %v925
    %vm932 = vweird.f32 %v926
    %vm933 = vmor %vm931, %vm932
    %v934 = vsel %vm933, %v926, %v930
    %v935 = vand.u32 2147483647, %v925
    %vm936 = vcmp.eq.f32.partialorder %v935, 8.507059e+37
    %v937 = vand.u32 %v925, 2147483648
    %v938 = vor.u32 1.1754944e-38, %v937
    %v939 = vsel %vm936, %v938, %v934
    %v940 = vmul.f32 1.0, %v939
    %v941 = vadd.f32 %v859, %v899
    %v942 = vxor.u32 %v941, 2147483648
    %v943 = vmul.f32 %v942, 1.442695
    %v944 = vpow.pop %v943
    %v945 = vadd.f32 %v944, 1.0
    %v946 = vrcp.pop %v945
    %v947 = vmul.f32 %v945, %v946
    %v948 = vsub.f32 1.0, %v947
    %v949 = vmul.f32 %v946, %v948
    %v950 = vadd.f32 %v946, %v949
    %vm951 = vweird.f32 %v945
    %vm952 = vweird.f32 %v946
    %vm953 = vmor %vm951, %vm952
    %v954 = vsel %vm953, %v946, %v950
    %v955 = vand.u32 2147483647, %v945
    %vm956 = vcmp.eq.f32.partialorder %v955, 8.507059e+37
    %v957 = vand.u32 %v945, 2147483648
    %v958 = vor.u32 1.1754944e-38, %v957
    %v959 = vsel %vm956, %v958, %v954
    %v960 = vmul.f32 1.0, %v959
    %v961 = vmul.f32 %v940, %v919
    %v962 = vadd.f32 %v860, %v961
    %v963 = vtanh.pop %v962
    %v964 = vsub.f32 1.0, %v960
    %v965 = vmul.f32 %v964, %v963
    %v966 = vmul.f32 %v960, %v855
    %v967 = vadd.f32 %v965, %v966
    %v968 = vstv %s856
    %vm969 = vcmp.lt.s32.totalorder %v968, %v62
    %v970 = vsel %vm969, 1, 0
    %971 = vset.pattern.permute.xlu0 0
    %972 = vperm.xlu0 %971, %v970
    %v973 = vpop.permute.xlu0 %972
    %vm974 = vcmp.eq.s32.totalorder %v973, 1
    %v975 = vsel %vm974, %v967, 0.0
    %s976 = scalar_lea.vmem [#allocation8], 48
    %977 = vst [vmem:[%s976] sm:$0xff] %v975
    %v978 = vsel %vm974, %v967, %v855
    %s979 = sadd.s32 %s113, 7
    %s980 = scalar_lea.vmem [#allocation3], 168
    %v981 = vld [vmem:[%s980] sm:$0xff]
    %v982 = vld [vmem:[%s980 + $0x8] sm:$0xff]
    %v983 = vld [vmem:[%s980 + $0x10] sm:$0xff]
    %984 = vmatpush.msra.mxu0 %v108
    %985 = vmatpush.msra.mxu0 %v105
    %986 = vmatpush.msra.mxu0 %v102
    %987 = vmatpush.msra.mxu0 %v99
    %988 = vmatpush.msra.mxu0 %v96
    %989 = vmatpush.msra.mxu0 %v93
    %990 = vmatpush.msra.mxu0 %v90
    %991 = vmatpush.msra.mxu0 %v87
    %992 = vmatpush.msra.mxu0 %v84
    %993 = vmatpush.msra.mxu0 %v81
    %994 = vmatpush.msra.mxu0 %v78
    %995 = vmatpush.msra.mxu0 %v75
    %996 = vmatpush.msra.mxu0 %v72
    %997 = vmatpush.msra.mxu0 %v69
    %998 = vmatpush.msra.mxu0 %v66
    %999 = vmatpush.msra.mxu0 %v63
    %1000 = vmatmul.f32.gmra.mxu0 %v978
    %v1001 = vpop.f32.mrf.mxu0
    %v1002 = vadd.f32 %v118, %v1001
    %1003 = vdwg.mxu0
    %1004 = vmatpush.msra.mxu0 %v109
    %1005 = vmatpush.msra.mxu0 %v106
    %1006 = vmatpush.msra.mxu0 %v103
    %1007 = vmatpush.msra.mxu0 %v100
    %1008 = vmatpush.msra.mxu0 %v97
    %1009 = vmatpush.msra.mxu0 %v94
    %1010 = vmatpush.msra.mxu0 %v91
    %1011 = vmatpush.msra.mxu0 %v88
    %1012 = vmatpush.msra.mxu0 %v85
    %1013 = vmatpush.msra.mxu0 %v82
    %1014 = vmatpush.msra.mxu0 %v79
    %1015 = vmatpush.msra.mxu0 %v76
    %1016 = vmatpush.msra.mxu0 %v73
    %1017 = vmatpush.msra.mxu0 %v70
    %1018 = vmatpush.msra.mxu0 %v67
    %1019 = vmatpush.msra.mxu0 %v64
    %1020 = vmatmul.f32.gmra.mxu0 %v978
    %v1021 = vpop.f32.mrf.mxu0
    %v1022 = vadd.f32 %v119, %v1021
    %1023 = vdwg.mxu0
    %1024 = vmatpush.msra.mxu0 %v110
    %1025 = vmatpush.msra.mxu0 %v107
    %1026 = vmatpush.msra.mxu0 %v104
    %1027 = vmatpush.msra.mxu0 %v101
    %1028 = vmatpush.msra.mxu0 %v98
    %1029 = vmatpush.msra.mxu0 %v95
    %1030 = vmatpush.msra.mxu0 %v92
    %1031 = vmatpush.msra.mxu0 %v89
    %1032 = vmatpush.msra.mxu0 %v86
    %1033 = vmatpush.msra.mxu0 %v83
    %1034 = vmatpush.msra.mxu0 %v80
    %1035 = vmatpush.msra.mxu0 %v77
    %1036 = vmatpush.msra.mxu0 %v74
    %1037 = vmatpush.msra.mxu0 %v71
    %1038 = vmatpush.msra.mxu0 %v68
    %1039 = vmatpush.msra.mxu0 %v65
    %1040 = vmatmul.f32.gmra.mxu0 %v978
    %v1041 = vpop.f32.mrf.mxu0
    %v1042 = vadd.f32 %v120, %v1041
    %1043 = vdwg.mxu0
    %v1044 = vadd.f32 %v981, %v1002
    %v1045 = vxor.u32 %v1044, 2147483648
    %v1046 = vmul.f32 %v1045, 1.442695
    %v1047 = vpow.pop %v1046
    %v1048 = vadd.f32 %v1047, 1.0
    %v1049 = vrcp.pop %v1048
    %v1050 = vmul.f32 %v1048, %v1049
    %v1051 = vsub.f32 1.0, %v1050
    %v1052 = vmul.f32 %v1049, %v1051
    %v1053 = vadd.f32 %v1049, %v1052
    %vm1054 = vweird.f32 %v1048
    %vm1055 = vweird.f32 %v1049
    %vm1056 = vmor %vm1054, %vm1055
    %v1057 = vsel %vm1056, %v1049, %v1053
    %v1058 = vand.u32 2147483647, %v1048
    %vm1059 = vcmp.eq.f32.partialorder %v1058, 8.507059e+37
    %v1060 = vand.u32 %v1048, 2147483648
    %v1061 = vor.u32 1.1754944e-38, %v1060
    %v1062 = vsel %vm1059, %v1061, %v1057
    %v1063 = vmul.f32 1.0, %v1062
    %v1064 = vadd.f32 %v982, %v1022
    %v1065 = vxor.u32 %v1064, 2147483648
    %v1066 = vmul.f32 %v1065, 1.442695
    %v1067 = vpow.pop %v1066
    %v1068 = vadd.f32 %v1067, 1.0
    %v1069 = vrcp.pop %v1068
    %v1070 = vmul.f32 %v1068, %v1069
    %v1071 = vsub.f32 1.0, %v1070
    %v1072 = vmul.f32 %v1069, %v1071
    %v1073 = vadd.f32 %v1069, %v1072
    %vm1074 = vweird.f32 %v1068
    %vm1075 = vweird.f32 %v1069
    %vm1076 = vmor %vm1074, %vm1075
    %v1077 = vsel %vm1076, %v1069, %v1073
    %v1078 = vand.u32 2147483647, %v1068
    %vm1079 = vcmp.eq.f32.partialorder %v1078, 8.507059e+37
    %v1080 = vand.u32 %v1068, 2147483648
    %v1081 = vor.u32 1.1754944e-38, %v1080
    %v1082 = vsel %vm1079, %v1081, %v1077
    %v1083 = vmul.f32 1.0, %v1082
    %v1084 = vmul.f32 %v1063, %v1042
    %v1085 = vadd.f32 %v983, %v1084
    %v1086 = vtanh.pop %v1085
    %v1087 = vsub.f32 1.0, %v1083
    %v1088 = vmul.f32 %v1087, %v1086
    %v1089 = vmul.f32 %v1083, %v978
    %v1090 = vadd.f32 %v1088, %v1089
    %v1091 = vstv %s979
    %vm1092 = vcmp.lt.s32.totalorder %v1091, %v62
    %v1093 = vsel %vm1092, 1, 0
    %1094 = vset.pattern.permute.xlu0 0
    %1095 = vperm.xlu0 %1094, %v1093
    %v1096 = vpop.permute.xlu0 %1095
    %vm1097 = vcmp.eq.s32.totalorder %v1096, 1
    %v1098 = vsel %vm1097, %v1090, 0.0
    %s1099 = scalar_lea.vmem [#allocation8], 56
    %1100 = vst [vmem:[%s1099] sm:$0xff] %v1098
    %v1101 = vsel %vm1097, %v1090, %v978
    %1102 = vst [vmem:[#allocation2] sm:$0xff] %v1101
    // Predicated region
    $region34: #{tpu_custom_call.1} parent=1 // pred_check
      _
    $region35: #{tpu_custom_call.1} parent=1 // pred_check_branch
      %1104 = sbr.rel (0) target = $region37
    $region36: #{tpu_custom_call.1} parent=1 // pred_region
      %1106 = vsyncadd [#allocation5], 0
      %s1107 = sshll.u32 [#allocation8], 4
      %s1108 = int_to_ptr.vmem [resolvable:$true] %s1107
      %s1109 = sshll.u32 %s5, 4
      %s1110 = int_to_ptr.hbm [resolvable:$true] %s1109
      %1115 = dma.vmem_to_hbm [thread:$0]  %s1108, 1024, %s1110, [#allocation5], 128, 128, 8
    $region37: #{tpu_custom_call.1} parent=1 // pred_fallthru
      _
    // Predicated region
    $region38: #{tpu_custom_call.1} parent=1 // pred_check
      _
    $region39: #{tpu_custom_call.1} parent=1 // pred_check_branch
      %1117 = sbr.rel (0) target = $region41
    $region40: #{tpu_custom_call.1} parent=1 // pred_region
      %1119 = dma.done [#allocation5], 1024
    $region41: #{tpu_custom_call.1} parent=1 // pred_fallthru
      _
    %1120 = vsyncpa [#allocation4], 1
    %1121 = vsyncpa [#allocation7], 1
    %1122 = vsyncpa [#allocation5], 1

</llo_original>
